<compile_context>
chip_gen: v6e
topology: v6e:2x2x1
jax: 0.10.0
libtpu: 0.0.40
codegen_flags: <defaults>
</compile_context>

<pallas_src>
import functools

import jax
import jax.numpy as jnp
from jax import lax
from jax.experimental import pallas as pl
from jax.experimental.pallas import tpu as pltpu


def _trimodal_kernel(x1_ref, x2_ref, x3_ref, w_in_ref, b_in_ref, w_oc_ref,
                     gf_ref):
    """One grid step == `bt` batch elements.

    x*_ref:   (bt*S, D)     VMEM  rows = flattened (batch, seq), f32
    w_in_ref: (3, 4, D, D)  VMEM  per modality: [Wq, Wk, Wv, Wo_x] in (in, out)
    b_in_ref: (3, 4, 1, D)  VMEM  per modality: [bq, bk, bv, bo]   (f32)
    w_oc_ref: (3, D, D)     VMEM  per modality: Wo ctx part (in, out)
    gf_ref:   (bt, 3S, D)   VMEM  rows [0:S]=out1, [S:2S]=out2, [2S:3S]=out3
    """
    bt, three_s, d = gf_ref.shape
    s = three_s // 3
    rows = bt * s
    scale = 1.0 / (float(d) ** 0.5)
    cdt = w_in_ref.dtype  # compute dtype for MXU operands (bf16 by default)

    xs = (x1_ref[...].astype(cdt),
          x2_ref[...].astype(cdt),
          x3_ref[...].astype(cdt))

    # Projections: q / k / v / base(= x @ Wo_x + bo) per modality.
    # Each is a tall (rows, D) @ (D, D) matmul with f32 accumulation.
    q, k, v, base = [], [], [], []
    for m in range(3):
        x = xs[m]

        def proj(j, x=x, m=m):
            return (jnp.dot(x, w_in_ref[m, j], preferred_element_type=jnp.float32)
                    + b_in_ref[m, j])

        # Fold 1/sqrt(D) into q (scales (rows, D), not the (S, S) scores),
        # then cast the attention operands to bf16 for the MXU.
        q.append((proj(0) * scale).astype(cdt).reshape(bt, s, d))
        k.append(proj(1).astype(cdt).reshape(bt, s, d))
        v.append(proj(2).astype(cdt).reshape(bt, s, d))
        base.append(proj(3))              # f32 (rows, D), kept for the epilogue

    def attend(qm, km, vm):
        # Batched over the bt batch dim — no per-batch Python unroll.
        sc = jnp.einsum("bqd,bkd->bqk", qm, km,
                        preferred_element_type=jnp.float32)
        mx = jnp.max(sc, axis=-1, keepdims=True)
        e = jnp.exp(sc - mx)
        p = e * pl.reciprocal(jnp.sum(e, axis=-1, keepdims=True), approx=True)
        # TODO(synk): nn.Dropout(0.1) is identity at inference; training-mode
        # dropout would need pltpu.prng_random_bits + masking on `p` here.
        ctx = jnp.einsum("bqk,bkd->bqd", p.astype(cdt), vm,
                         preferred_element_type=jnp.float32)
        return ctx.reshape(rows, d).astype(cdt)

    # Modality m attends to modality (m+1) % 3; write one full slab each.
    # TODO(synk): for production sizes, pad D to a multiple of 128 in the
    # wrapper so these stores are fully lane-dense (D=32 here -> masked vst).
    for m, kv in ((0, 1), (1, 2), (2, 0)):
        ctx = attend(q[m], k[kv], v[kv])
        out_m = base[m] + jnp.dot(ctx, w_oc_ref[m],
                                  preferred_element_type=jnp.float32)
        gf_ref[:, m * s:(m + 1) * s, :] = (
            out_m.reshape(bt, s, d).astype(gf_ref.dtype))


def _pick_batch_tile(batch, seq, max_rows=256, prefer_multistep=False):
    """Largest batch tile that (a) divides batch, (b) keeps the row block a
    multiple of 8 sublanes (or the full array), and (c) stays within a
    conservative row budget that fits scoped-VMEM defaults on v5e/v6e/v7x.
    Set prefer_multistep=True on v7x (2 TensorCores) to keep >=2 grid steps."""
    max_bt = max(1, min(batch, max_rows // max(seq, 1)))
    fallback = None
    for cand in range(max_bt, 0, -1):
        if batch % cand != 0:
            continue
        if (cand * seq) % 8 != 0 and cand != batch:
            continue
        if not prefer_multistep:
            return cand
        if batch // cand >= 2:
            return cand
        if fallback is None:
            fallback = cand
    return fallback if fallback is not None else batch  # full block always legal


def trimodal_cross_attention(x1, x2, x3, w_in, b_in, w_oc, *,
                             batch_tile=None, weight_dtype=jnp.bfloat16,
                             prefer_multistep=False, vmem_limit_bytes=None):
    """Pallas-backed forward of TriModalCrossAttention (eval mode).

    x1, x2, x3 : (B, S, D)
    w_in       : (3, 4, D, D)  per modality [Wq, Wk, Wv, Wo_x] in (in, out)
    b_in       : (3, 4, 1, D)  per modality [bq, bk, bv, bo]
    w_oc       : (3, D, D)     per modality Wo ctx part in (in, out)
    Returns (out1, out2, out3, global_feature): (B,S,D) x3 and (B, 3S, D).
    """
    b, s, d = x1.shape
    if batch_tile is None:
        batch_tile = _pick_batch_tile(b, s, prefer_multistep=prefer_multistep)
    assert b % batch_tile == 0, (b, batch_tile)
    grid = (b // batch_tile,)
    rows = batch_tile * s

    # Feed the MXU bf16 (f32 accumulation stays inside the kernel).
    w_in = w_in.astype(weight_dtype)
    w_oc = w_oc.astype(weight_dtype)
    b_in = b_in.astype(jnp.float32)

    # Flatten (B, S, D) -> (B*S, D): free row-major reshape; lets the kernel
    # run each projection as a single tall matmul.
    x1f = x1.reshape(b * s, d)
    x2f = x2.reshape(b * s, d)
    x3f = x3.reshape(b * s, d)

    row_spec = pl.BlockSpec((rows, d), lambda i: (i, 0))

    def resident_spec(shape):
        n = len(shape)
        return pl.BlockSpec(shape, lambda i, n=n: (0,) * n)

    out_shape = jax.ShapeDtypeStruct((b, 3 * s, d), x1.dtype)
    out_spec = pl.BlockSpec((batch_tile, 3 * s, d), lambda i: (i, 0, 0))

    grid_spec = pltpu.PrefetchScalarGridSpec(
        num_scalar_prefetch=0,
        grid=grid,
        in_specs=[row_spec, row_spec, row_spec,
                  resident_spec(w_in.shape), resident_spec(b_in.shape),
                  resident_spec(w_oc.shape)],
        out_specs=out_spec,
    )

    itemsize = jnp.dtype(x1.dtype).itemsize
    w_itemsize = jnp.dtype(weight_dtype).itemsize
    cost = pl.CostEstimate(
        flops=int(30 * b * s * d * d + 12 * b * s * s * d),
        transcendentals=int(3 * b * s * (s + 1)),
        bytes_accessed=int(
            3 * b * s * d * itemsize            # activations in
            + b * 3 * s * d * itemsize          # global feature out
            + (w_in.size + w_oc.size) * w_itemsize
            + b_in.size * 4),
    )

    cp_kwargs = dict(dimension_semantics=("parallel",))
    if vmem_limit_bytes is not None:
        # Generation-aware: raise toward 64-128 MiB on v5e/v6e for big tiles;
        # keep <= ~32 MiB scoped on v7x (64 MiB physical VMEM).
        cp_kwargs["vmem_limit_bytes"] = int(vmem_limit_bytes)

    gf = pl.pallas_call(
        _trimodal_kernel,
        out_shape=out_shape,
        grid_spec=grid_spec,
        cost_estimate=cost,
        compiler_params=pltpu.CompilerParams(**cp_kwargs),
    )(x1f, x2f, x3f, w_in, b_in, w_oc)

    out1 = gf[:, 0:s, :]
    out2 = gf[:, s:2 * s, :]
    out3 = gf[:, 2 * s:, :]
    return out1, out2, out3, gf


def make_params(key, d, dtype=jnp.float32):
    """Synthetic checkpoint in PyTorch nn.Linear layout: W is (out, in)."""
    names = []
    for m in (1, 2, 3):
        for kind in ("q", "k", "v"):
            names.append((f"{kind}{m}", (d, d)))
    for m in (1, 2, 3):
        names.append((f"o{m}", (d, 2 * d)))
    keys = jax.random.split(key, 2 * len(names))
    params = {}
    for idx, (name, shape) in enumerate(names):
        params[f"W_{name}"] = 0.1 * jax.random.normal(keys[2 * idx], shape, dtype)
        params[f"b_{name}"] = 0.1 * jax.random.normal(keys[2 * idx + 1],
                                                      (shape[0],), dtype)
    return params


def pack_params(params):
    """Pack torch-layout params into the (in, out) tensors the kernel uses.

    Returns:
      w_in : (3, 4, D, D)  per modality [Wq, Wk, Wv, Wo_x]
      b_in : (3, 4, 1, D)  per modality [bq, bk, bv, bo]
      w_oc : (3, D, D)     per modality Wo ctx part
    """
    d = params["W_q1"].shape[0]

    def per_modality_w(m):
        return jnp.stack([params[f"W_q{m}"].T,
                          params[f"W_k{m}"].T,
                          params[f"W_v{m}"].T,
                          params[f"W_o{m}"][:, :d].T])        # (4, D, D)

    def per_modality_b(m):
        return jnp.stack([params[f"b_q{m}"],
                          params[f"b_k{m}"],
                          params[f"b_v{m}"],
                          params[f"b_o{m}"]]).reshape(4, 1, d)  # (4, 1, D)

    w_in = jnp.stack([per_modality_w(m) for m in (1, 2, 3)])    # (3, 4, D, D)
    b_in = jnp.stack([per_modality_b(m) for m in (1, 2, 3)])    # (3, 4, 1, D)
    w_oc = jnp.stack([params[f"W_o{m}"][:, d:].T for m in (1, 2, 3)])  # (3,D,D)
    return w_in, b_in, w_oc


def _reference(x1, x2, x3, params):
    """Plain-JAX f32 reference matching the PyTorch forward (eval mode)."""
    d = x1.shape[-1]
    lin = lambda x, name: x @ params[f"W_{name}"].T + params[f"b_{name}"]

    q1, k1, v1 = lin(x1, "q1"), lin(x1, "k1"), lin(x1, "v1")
    q2, k2, v2 = lin(x2, "q2"), lin(x2, "k2"), lin(x2, "v2")
    q3, k3, v3 = lin(x3, "q3"), lin(x3, "k3"), lin(x3, "v3")

    def attend(q, k, v):
        sc = jnp.einsum("bqd,bkd->bqk", q, k) / (d ** 0.5)
        p = jax.nn.softmax(sc, axis=-1)
        return jnp.einsum("bqk,bkd->bqd", p, v)

    c1, c2, c3 = attend(q1, k2, v2), attend(q2, k3, v3), attend(q3, k1, v1)
    o1 = lin(jnp.concatenate([x1, c1], -1), "o1")
    o2 = lin(jnp.concatenate([x2, c2], -1), "o2")
    o3 = lin(jnp.concatenate([x3, c3], -1), "o3")
    return o1, o2, o3, jnp.concatenate([o1, o2, o3], axis=1)


if __name__ == "__main__":
    B, S, D = 4, 8, 32   # batch, seq, input_dim

    key = jax.random.PRNGKey(0)
    kx1, kx2, kx3, kp = jax.random.split(key, 4)

    x1 = jax.random.normal(kx1, (B, S, D), jnp.float32)
    x2 = jax.random.normal(kx2, (B, S, D), jnp.float32)
    x3 = jax.random.normal(kx3, (B, S, D), jnp.float32)

    params = make_params(kp, D)
    w_in, b_in, w_oc = pack_params(params)

    fn = jax.jit(functools.partial(trimodal_cross_attention,
                                   weight_dtype=jnp.bfloat16))
    o1, o2, o3, gf = fn(x1, x2, x3, w_in, b_in, w_oc)
    jax.block_until_ready((o1, o2, o3, gf))

    r1, r2, r3, rg = _reference(x1, x2, x3, params)
    # Tolerance accounts for bf16 MXU operands (f32 accumulation) and the EUP
    # approximate reciprocal in the softmax denominator.
    for got, want in ((o1, r1), (o2, r2), (o3, r3), (gf, rg)):
        assert got.shape == want.shape, (got.shape, want.shape)
        max_err = float(jnp.max(jnp.abs(got.astype(jnp.float32) - want)))
        assert jnp.allclose(got.astype(jnp.float32), want,
                            atol=5e-2, rtol=5e-2), max_err

    print("KERNEL_OK")
</pallas_src>

<mosaic_0001>
module attributes {stable_mosaic.version = 11 : i64} {
  func.func @_trimodal_kernel(%arg0: i32, %arg1: memref<32x32xf32, #tpu.memory_space<vmem>>, %arg2: memref<32x32xf32, #tpu.memory_space<vmem>>, %arg3: memref<32x32xf32, #tpu.memory_space<vmem>>, %arg4: memref<3x4x32x32xbf16, #tpu.memory_space<vmem>>, %arg5: memref<3x4x1x32xf32, #tpu.memory_space<vmem>>, %arg6: memref<3x32x32xbf16, #tpu.memory_space<vmem>>, %arg7: memref<4x24x32xf32, #tpu.memory_space<vmem>>) attributes {dimension_semantics = [#tpu.dimension_semantics<parallel>], iteration_bounds = array<i64: 1>, scalar_prefetch = 0 : i64, scratch_operands = 0 : i64, tpu.core_type = #tpu.core_type<tc>, window_params = [{transform_indices = @transform_0, window_bounds = array<i64: 32, 32>}, {transform_indices = @transform_1, window_bounds = array<i64: 32, 32>}, {transform_indices = @transform_2, window_bounds = array<i64: 32, 32>}, {pipeline_mode = #tpu.pipeline_mode<synchronous>, transform_indices = @transform_3, window_bounds = array<i64: 3, 4, 32, 32>}, {pipeline_mode = #tpu.pipeline_mode<synchronous>, transform_indices = @transform_4, window_bounds = array<i64: 3, 4, 1, 32>}, {pipeline_mode = #tpu.pipeline_mode<synchronous>, transform_indices = @transform_5, window_bounds = array<i64: 3, 32, 32>}, {transform_indices = @transform_6, window_bounds = array<i64: 4, 24, 32>}]} {
    %c0 = arith.constant 0 : index
    %c0_0 = arith.constant 0 : index
    %0 = vector.load %arg1[%c0, %c0_0] : memref<32x32xf32, #tpu.memory_space<vmem>>, vector<32x32xf32>
    %1 = arith.truncf %0 : vector<32x32xf32> to vector<32x32xbf16>
    %c0_1 = arith.constant 0 : index
    %c0_2 = arith.constant 0 : index
    %2 = vector.load %arg2[%c0_1, %c0_2] : memref<32x32xf32, #tpu.memory_space<vmem>>, vector<32x32xf32>
    %3 = arith.truncf %2 : vector<32x32xf32> to vector<32x32xbf16>
    %c0_3 = arith.constant 0 : index
    %c0_4 = arith.constant 0 : index
    %4 = vector.load %arg3[%c0_3, %c0_4] : memref<32x32xf32, #tpu.memory_space<vmem>>, vector<32x32xf32>
    %5 = arith.truncf %4 : vector<32x32xf32> to vector<32x32xbf16>
    %c0_5 = arith.constant 0 : index
    %c0_6 = arith.constant 0 : index
    %c0_7 = arith.constant 0 : index
    %c0_8 = arith.constant 0 : index
    %6 = vector.load %arg4[%c0_5, %c0_6, %c0_7, %c0_8] : memref<3x4x32x32xbf16, #tpu.memory_space<vmem>>, vector<1x1x32x32xbf16>
    %7 = vector.shape_cast %6 : vector<1x1x32x32xbf16> to vector<32x32xbf16>
    %cst = arith.constant dense<0.000000e+00> : vector<32x32xf32>
    %8 = tpu.matmul %1, %7, %cst {dimension_numbers = #tpu.dot_dimension_numbers<[1], [0], [0], [1], [0, 0, 1, 1], [], []>} : vector<32x32xbf16>, vector<32x32xbf16>, vector<32x32xf32> -> vector<32x32xf32>
    %c0_9 = arith.constant 0 : index
    %c0_10 = arith.constant 0 : index
    %c0_11 = arith.constant 0 : index
    %c0_12 = arith.constant 0 : index
    %9 = vector.load %arg5[%c0_9, %c0_10, %c0_11, %c0_12] : memref<3x4x1x32xf32, #tpu.memory_space<vmem>>, vector<1x1x1x32xf32>
    %10 = vector.shape_cast %9 : vector<1x1x1x32xf32> to vector<1x32xf32>
    %11 = vector.broadcast %10 : vector<1x32xf32> to vector<32x32xf32>
    %12 = arith.addf %8, %11 : vector<32x32xf32>
    %cst_13 = arith.constant 0.176776692 : f32
    %13 = vector.broadcast %cst_13 : f32 to vector<32x32xf32>
    %14 = arith.mulf %12, %13 : vector<32x32xf32>
    %15 = arith.truncf %14 : vector<32x32xf32> to vector<32x32xbf16>
    %16 = vector.shape_cast %15 : vector<32x32xbf16> to vector<4x8x32xbf16>
    %c0_14 = arith.constant 0 : index
    %c1 = arith.constant 1 : index
    %c0_15 = arith.constant 0 : index
    %c0_16 = arith.constant 0 : index
    %17 = vector.load %arg4[%c0_14, %c1, %c0_15, %c0_16] : memref<3x4x32x32xbf16, #tpu.memory_space<vmem>>, vector<1x1x32x32xbf16>
    %18 = vector.shape_cast %17 : vector<1x1x32x32xbf16> to vector<32x32xbf16>
    %cst_17 = arith.constant dense<0.000000e+00> : vector<32x32xf32>
    %19 = tpu.matmul %1, %18, %cst_17 {dimension_numbers = #tpu.dot_dimension_numbers<[1], [0], [0], [1], [0, 0, 1, 1], [], []>} : vector<32x32xbf16>, vector<32x32xbf16>, vector<32x32xf32> -> vector<32x32xf32>
    %c0_18 = arith.constant 0 : index
    %c1_19 = arith.constant 1 : index
    %c0_20 = arith.constant 0 : index
    %c0_21 = arith.constant 0 : index
    %20 = vector.load %arg5[%c0_18, %c1_19, %c0_20, %c0_21] : memref<3x4x1x32xf32, #tpu.memory_space<vmem>>, vector<1x1x1x32xf32>
    %21 = vector.shape_cast %20 : vector<1x1x1x32xf32> to vector<1x32xf32>
    %22 = vector.broadcast %21 : vector<1x32xf32> to vector<32x32xf32>
    %23 = arith.addf %19, %22 : vector<32x32xf32>
    %24 = arith.truncf %23 : vector<32x32xf32> to vector<32x32xbf16>
    %25 = vector.shape_cast %24 : vector<32x32xbf16> to vector<4x8x32xbf16>
    %c0_22 = arith.constant 0 : index
    %c2 = arith.constant 2 : index
    %c0_23 = arith.constant 0 : index
    %c0_24 = arith.constant 0 : index
    %26 = vector.load %arg4[%c0_22, %c2, %c0_23, %c0_24] : memref<3x4x32x32xbf16, #tpu.memory_space<vmem>>, vector<1x1x32x32xbf16>
    %27 = vector.shape_cast %26 : vector<1x1x32x32xbf16> to vector<32x32xbf16>
    %cst_25 = arith.constant dense<0.000000e+00> : vector<32x32xf32>
    %28 = tpu.matmul %1, %27, %cst_25 {dimension_numbers = #tpu.dot_dimension_numbers<[1], [0], [0], [1], [0, 0, 1, 1], [], []>} : vector<32x32xbf16>, vector<32x32xbf16>, vector<32x32xf32> -> vector<32x32xf32>
    %c0_26 = arith.constant 0 : index
    %c2_27 = arith.constant 2 : index
    %c0_28 = arith.constant 0 : index
    %c0_29 = arith.constant 0 : index
    %29 = vector.load %arg5[%c0_26, %c2_27, %c0_28, %c0_29] : memref<3x4x1x32xf32, #tpu.memory_space<vmem>>, vector<1x1x1x32xf32>
    %30 = vector.shape_cast %29 : vector<1x1x1x32xf32> to vector<1x32xf32>
    %31 = vector.broadcast %30 : vector<1x32xf32> to vector<32x32xf32>
    %32 = arith.addf %28, %31 : vector<32x32xf32>
    %33 = arith.truncf %32 : vector<32x32xf32> to vector<32x32xbf16>
    %34 = vector.shape_cast %33 : vector<32x32xbf16> to vector<4x8x32xbf16>
    %c0_30 = arith.constant 0 : index
    %c3 = arith.constant 3 : index
    %c0_31 = arith.constant 0 : index
    %c0_32 = arith.constant 0 : index
    %35 = vector.load %arg4[%c0_30, %c3, %c0_31, %c0_32] : memref<3x4x32x32xbf16, #tpu.memory_space<vmem>>, vector<1x1x32x32xbf16>
    %36 = vector.shape_cast %35 : vector<1x1x32x32xbf16> to vector<32x32xbf16>
    %cst_33 = arith.constant dense<0.000000e+00> : vector<32x32xf32>
    %37 = tpu.matmul %1, %36, %cst_33 {dimension_numbers = #tpu.dot_dimension_numbers<[1], [0], [0], [1], [0, 0, 1, 1], [], []>} : vector<32x32xbf16>, vector<32x32xbf16>, vector<32x32xf32> -> vector<32x32xf32>
    %c0_34 = arith.constant 0 : index
    %c3_35 = arith.constant 3 : index
    %c0_36 = arith.constant 0 : index
    %c0_37 = arith.constant 0 : index
    %38 = vector.load %arg5[%c0_34, %c3_35, %c0_36, %c0_37] : memref<3x4x1x32xf32, #tpu.memory_space<vmem>>, vector<1x1x1x32xf32>
    %39 = vector.shape_cast %38 : vector<1x1x1x32xf32> to vector<1x32xf32>
    %40 = vector.broadcast %39 : vector<1x32xf32> to vector<32x32xf32>
    %41 = arith.addf %37, %40 : vector<32x32xf32>
    %c1_38 = arith.constant 1 : index
    %c0_39 = arith.constant 0 : index
    %c0_40 = arith.constant 0 : index
    %c0_41 = arith.constant 0 : index
    %42 = vector.load %arg4[%c1_38, %c0_39, %c0_40, %c0_41] : memref<3x4x32x32xbf16, #tpu.memory_space<vmem>>, vector<1x1x32x32xbf16>
    %43 = vector.shape_cast %42 : vector<1x1x32x32xbf16> to vector<32x32xbf16>
    %cst_42 = arith.constant dense<0.000000e+00> : vector<32x32xf32>
    %44 = tpu.matmul %3, %43, %cst_42 {dimension_numbers = #tpu.dot_dimension_numbers<[1], [0], [0], [1], [0, 0, 1, 1], [], []>} : vector<32x32xbf16>, vector<32x32xbf16>, vector<32x32xf32> -> vector<32x32xf32>
    %c1_43 = arith.constant 1 : index
    %c0_44 = arith.constant 0 : index
    %c0_45 = arith.constant 0 : index
    %c0_46 = arith.constant 0 : index
    %45 = vector.load %arg5[%c1_43, %c0_44, %c0_45, %c0_46] : memref<3x4x1x32xf32, #tpu.memory_space<vmem>>, vector<1x1x1x32xf32>
    %46 = vector.shape_cast %45 : vector<1x1x1x32xf32> to vector<1x32xf32>
    %47 = vector.broadcast %46 : vector<1x32xf32> to vector<32x32xf32>
    %48 = arith.addf %44, %47 : vector<32x32xf32>
    %cst_47 = arith.constant 0.176776692 : f32
    %49 = vector.broadcast %cst_47 : f32 to vector<32x32xf32>
    %50 = arith.mulf %48, %49 : vector<32x32xf32>
    %51 = arith.truncf %50 : vector<32x32xf32> to vector<32x32xbf16>
    %52 = vector.shape_cast %51 : vector<32x32xbf16> to vector<4x8x32xbf16>
    %c1_48 = arith.constant 1 : index
    %c1_49 = arith.constant 1 : index
    %c0_50 = arith.constant 0 : index
    %c0_51 = arith.constant 0 : index
    %53 = vector.load %arg4[%c1_48, %c1_49, %c0_50, %c0_51] : memref<3x4x32x32xbf16, #tpu.memory_space<vmem>>, vector<1x1x32x32xbf16>
    %54 = vector.shape_cast %53 : vector<1x1x32x32xbf16> to vector<32x32xbf16>
    %cst_52 = arith.constant dense<0.000000e+00> : vector<32x32xf32>
    %55 = tpu.matmul %3, %54, %cst_52 {dimension_numbers = #tpu.dot_dimension_numbers<[1], [0], [0], [1], [0, 0, 1, 1], [], []>} : vector<32x32xbf16>, vector<32x32xbf16>, vector<32x32xf32> -> vector<32x32xf32>
    %c1_53 = arith.constant 1 : index
    %c1_54 = arith.constant 1 : index
    %c0_55 = arith.constant 0 : index
    %c0_56 = arith.constant 0 : index
    %56 = vector.load %arg5[%c1_53, %c1_54, %c0_55, %c0_56] : memref<3x4x1x32xf32, #tpu.memory_space<vmem>>, vector<1x1x1x32xf32>
    %57 = vector.shape_cast %56 : vector<1x1x1x32xf32> to vector<1x32xf32>
    %58 = vector.broadcast %57 : vector<1x32xf32> to vector<32x32xf32>
    %59 = arith.addf %55, %58 : vector<32x32xf32>
    %60 = arith.truncf %59 : vector<32x32xf32> to vector<32x32xbf16>
    %61 = vector.shape_cast %60 : vector<32x32xbf16> to vector<4x8x32xbf16>
    %c1_57 = arith.constant 1 : index
    %c2_58 = arith.constant 2 : index
    %c0_59 = arith.constant 0 : index
    %c0_60 = arith.constant 0 : index
    %62 = vector.load %arg4[%c1_57, %c2_58, %c0_59, %c0_60] : memref<3x4x32x32xbf16, #tpu.memory_space<vmem>>, vector<1x1x32x32xbf16>
    %63 = vector.shape_cast %62 : vector<1x1x32x32xbf16> to vector<32x32xbf16>
    %cst_61 = arith.constant dense<0.000000e+00> : vector<32x32xf32>
    %64 = tpu.matmul %3, %63, %cst_61 {dimension_numbers = #tpu.dot_dimension_numbers<[1], [0], [0], [1], [0, 0, 1, 1], [], []>} : vector<32x32xbf16>, vector<32x32xbf16>, vector<32x32xf32> -> vector<32x32xf32>
    %c1_62 = arith.constant 1 : index
    %c2_63 = arith.constant 2 : index
    %c0_64 = arith.constant 0 : index
    %c0_65 = arith.constant 0 : index
    %65 = vector.load %arg5[%c1_62, %c2_63, %c0_64, %c0_65] : memref<3x4x1x32xf32, #tpu.memory_space<vmem>>, vector<1x1x1x32xf32>
    %66 = vector.shape_cast %65 : vector<1x1x1x32xf32> to vector<1x32xf32>
    %67 = vector.broadcast %66 : vector<1x32xf32> to vector<32x32xf32>
    %68 = arith.addf %64, %67 : vector<32x32xf32>
    %69 = arith.truncf %68 : vector<32x32xf32> to vector<32x32xbf16>
    %70 = vector.shape_cast %69 : vector<32x32xbf16> to vector<4x8x32xbf16>
    %c1_66 = arith.constant 1 : index
    %c3_67 = arith.constant 3 : index
    %c0_68 = arith.constant 0 : index
    %c0_69 = arith.constant 0 : index
    %71 = vector.load %arg4[%c1_66, %c3_67, %c0_68, %c0_69] : memref<3x4x32x32xbf16, #tpu.memory_space<vmem>>, vector<1x1x32x32xbf16>
    %72 = vector.shape_cast %71 : vector<1x1x32x32xbf16> to vector<32x32xbf16>
    %cst_70 = arith.constant dense<0.000000e+00> : vector<32x32xf32>
    %73 = tpu.matmul %3, %72, %cst_70 {dimension_numbers = #tpu.dot_dimension_numbers<[1], [0], [0], [1], [0, 0, 1, 1], [], []>} : vector<32x32xbf16>, vector<32x32xbf16>, vector<32x32xf32> -> vector<32x32xf32>
    %c1_71 = arith.constant 1 : index
    %c3_72 = arith.constant 3 : index
    %c0_73 = arith.constant 0 : index
    %c0_74 = arith.constant 0 : index
    %74 = vector.load %arg5[%c1_71, %c3_72, %c0_73, %c0_74] : memref<3x4x1x32xf32, #tpu.memory_space<vmem>>, vector<1x1x1x32xf32>
    %75 = vector.shape_cast %74 : vector<1x1x1x32xf32> to vector<1x32xf32>
    %76 = vector.broadcast %75 : vector<1x32xf32> to vector<32x32xf32>
    %77 = arith.addf %73, %76 : vector<32x32xf32>
    %c2_75 = arith.constant 2 : index
    %c0_76 = arith.constant 0 : index
    %c0_77 = arith.constant 0 : index
    %c0_78 = arith.constant 0 : index
    %78 = vector.load %arg4[%c2_75, %c0_76, %c0_77, %c0_78] : memref<3x4x32x32xbf16, #tpu.memory_space<vmem>>, vector<1x1x32x32xbf16>
    %79 = vector.shape_cast %78 : vector<1x1x32x32xbf16> to vector<32x32xbf16>
    %cst_79 = arith.constant dense<0.000000e+00> : vector<32x32xf32>
    %80 = tpu.matmul %5, %79, %cst_79 {dimension_numbers = #tpu.dot_dimension_numbers<[1], [0], [0], [1], [0, 0, 1, 1], [], []>} : vector<32x32xbf16>, vector<32x32xbf16>, vector<32x32xf32> -> vector<32x32xf32>
    %c2_80 = arith.constant 2 : index
    %c0_81 = arith.constant 0 : index
    %c0_82 = arith.constant 0 : index
    %c0_83 = arith.constant 0 : index
    %81 = vector.load %arg5[%c2_80, %c0_81, %c0_82, %c0_83] : memref<3x4x1x32xf32, #tpu.memory_space<vmem>>, vector<1x1x1x32xf32>
    %82 = vector.shape_cast %81 : vector<1x1x1x32xf32> to vector<1x32xf32>
    %83 = vector.broadcast %82 : vector<1x32xf32> to vector<32x32xf32>
    %84 = arith.addf %80, %83 : vector<32x32xf32>
    %cst_84 = arith.constant 0.176776692 : f32
    %85 = vector.broadcast %cst_84 : f32 to vector<32x32xf32>
    %86 = arith.mulf %84, %85 : vector<32x32xf32>
    %87 = arith.truncf %86 : vector<32x32xf32> to vector<32x32xbf16>
    %88 = vector.shape_cast %87 : vector<32x32xbf16> to vector<4x8x32xbf16>
    %c2_85 = arith.constant 2 : index
    %c1_86 = arith.constant 1 : index
    %c0_87 = arith.constant 0 : index
    %c0_88 = arith.constant 0 : index
    %89 = vector.load %arg4[%c2_85, %c1_86, %c0_87, %c0_88] : memref<3x4x32x32xbf16, #tpu.memory_space<vmem>>, vector<1x1x32x32xbf16>
    %90 = vector.shape_cast %89 : vector<1x1x32x32xbf16> to vector<32x32xbf16>
    %cst_89 = arith.constant dense<0.000000e+00> : vector<32x32xf32>
    %91 = tpu.matmul %5, %90, %cst_89 {dimension_numbers = #tpu.dot_dimension_numbers<[1], [0], [0], [1], [0, 0, 1, 1], [], []>} : vector<32x32xbf16>, vector<32x32xbf16>, vector<32x32xf32> -> vector<32x32xf32>
    %c2_90 = arith.constant 2 : index
    %c1_91 = arith.constant 1 : index
    %c0_92 = arith.constant 0 : index
    %c0_93 = arith.constant 0 : index
    %92 = vector.load %arg5[%c2_90, %c1_91, %c0_92, %c0_93] : memref<3x4x1x32xf32, #tpu.memory_space<vmem>>, vector<1x1x1x32xf32>
    %93 = vector.shape_cast %92 : vector<1x1x1x32xf32> to vector<1x32xf32>
    %94 = vector.broadcast %93 : vector<1x32xf32> to vector<32x32xf32>
    %95 = arith.addf %91, %94 : vector<32x32xf32>
    %96 = arith.truncf %95 : vector<32x32xf32> to vector<32x32xbf16>
    %97 = vector.shape_cast %96 : vector<32x32xbf16> to vector<4x8x32xbf16>
    %c2_94 = arith.constant 2 : index
    %c2_95 = arith.constant 2 : index
    %c0_96 = arith.constant 0 : index
    %c0_97 = arith.constant 0 : index
    %98 = vector.load %arg4[%c2_94, %c2_95, %c0_96, %c0_97] : memref<3x4x32x32xbf16, #tpu.memory_space<vmem>>, vector<1x1x32x32xbf16>
    %99 = vector.shape_cast %98 : vector<1x1x32x32xbf16> to vector<32x32xbf16>
    %cst_98 = arith.constant dense<0.000000e+00> : vector<32x32xf32>
    %100 = tpu.matmul %5, %99, %cst_98 {dimension_numbers = #tpu.dot_dimension_numbers<[1], [0], [0], [1], [0, 0, 1, 1], [], []>} : vector<32x32xbf16>, vector<32x32xbf16>, vector<32x32xf32> -> vector<32x32xf32>
    %c2_99 = arith.constant 2 : index
    %c2_100 = arith.constant 2 : index
    %c0_101 = arith.constant 0 : index
    %c0_102 = arith.constant 0 : index
    %101 = vector.load %arg5[%c2_99, %c2_100, %c0_101, %c0_102] : memref<3x4x1x32xf32, #tpu.memory_space<vmem>>, vector<1x1x1x32xf32>
    %102 = vector.shape_cast %101 : vector<1x1x1x32xf32> to vector<1x32xf32>
    %103 = vector.broadcast %102 : vector<1x32xf32> to vector<32x32xf32>
    %104 = arith.addf %100, %103 : vector<32x32xf32>
    %105 = arith.truncf %104 : vector<32x32xf32> to vector<32x32xbf16>
    %106 = vector.shape_cast %105 : vector<32x32xbf16> to vector<4x8x32xbf16>
    %c2_103 = arith.constant 2 : index
    %c3_104 = arith.constant 3 : index
    %c0_105 = arith.constant 0 : index
    %c0_106 = arith.constant 0 : index
    %107 = vector.load %arg4[%c2_103, %c3_104, %c0_105, %c0_106] : memref<3x4x32x32xbf16, #tpu.memory_space<vmem>>, vector<1x1x32x32xbf16>
    %108 = vector.shape_cast %107 : vector<1x1x32x32xbf16> to vector<32x32xbf16>
    %cst_107 = arith.constant dense<0.000000e+00> : vector<32x32xf32>
    %109 = tpu.matmul %5, %108, %cst_107 {dimension_numbers = #tpu.dot_dimension_numbers<[1], [0], [0], [1], [0, 0, 1, 1], [], []>} : vector<32x32xbf16>, vector<32x32xbf16>, vector<32x32xf32> -> vector<32x32xf32>
    %c2_108 = arith.constant 2 : index
    %c3_109 = arith.constant 3 : index
    %c0_110 = arith.constant 0 : index
    %c0_111 = arith.constant 0 : index
    %110 = vector.load %arg5[%c2_108, %c3_109, %c0_110, %c0_111] : memref<3x4x1x32xf32, #tpu.memory_space<vmem>>, vector<1x1x1x32xf32>
    %111 = vector.shape_cast %110 : vector<1x1x1x32xf32> to vector<1x32xf32>
    %112 = vector.broadcast %111 : vector<1x32xf32> to vector<32x32xf32>
    %113 = arith.addf %109, %112 : vector<32x32xf32>
    "tpu.trace_start"() <{level = 10 : i32, message = "bqd,bkd->bqk"}> : () -> ()
    %cst_112 = arith.constant dense<0.000000e+00> : vector<4x8x8xf32>
    %114 = tpu.matmul %16, %61, %cst_112 {dimension_numbers = #tpu.dot_dimension_numbers<[2], [2], [1], [1], [0, 0, 0, 1, 1, 1], [0], [0]>} : vector<4x8x32xbf16>, vector<4x8x32xbf16>, vector<4x8x8xf32> -> vector<4x8x8xf32>
    "tpu.trace_stop"() : () -> ()
    %cst_113 = arith.constant dense<0xFF800000> : vector<4x8xf32>
    %115 = vector.multi_reduction <maximumf>, %114, %cst_113 [2] : vector<4x8x8xf32> to vector<4x8xf32>
    %116 = vector.shape_cast %115 : vector<4x8xf32> to vector<4x8x1xf32>
    %117 = vector.broadcast %116 : vector<4x8x1xf32> to vector<4x8x8xf32>
    %118 = arith.subf %114, %117 : vector<4x8x8xf32>
    %119 = math.exp %118 : vector<4x8x8xf32>
    %cst_114 = arith.constant dense<0.000000e+00> : vector<4x8xf32>
    %120 = vector.multi_reduction <add>, %119, %cst_114 [2] : vector<4x8x8xf32> to vector<4x8xf32>
    %121 = vector.shape_cast %120 : vector<4x8xf32> to vector<4x8x1xf32>
    %122 = tpu.reciprocal %121 {approx = true} : vector<4x8x1xf32> -> vector<4x8x1xf32>
    %123 = vector.broadcast %122 : vector<4x8x1xf32> to vector<4x8x8xf32>
    %124 = arith.mulf %119, %123 : vector<4x8x8xf32>
    %125 = arith.truncf %124 : vector<4x8x8xf32> to vector<4x8x8xbf16>
    "tpu.trace_start"() <{level = 10 : i32, message = "bqk,bkd->bqd"}> : () -> ()
    %cst_115 = arith.constant dense<0.000000e+00> : vector<4x8x32xf32>
    %126 = tpu.matmul %125, %70, %cst_115 {dimension_numbers = #tpu.dot_dimension_numbers<[2], [1], [1], [2], [0, 0, 0, 1, 1, 2], [0], [0]>} : vector<4x8x8xbf16>, vector<4x8x32xbf16>, vector<4x8x32xf32> -> vector<4x8x32xf32>
    "tpu.trace_stop"() : () -> ()
    %127 = vector.shape_cast %126 : vector<4x8x32xf32> to vector<32x32xf32>
    %128 = arith.truncf %127 : vector<32x32xf32> to vector<32x32xbf16>
    %c0_116 = arith.constant 0 : index
    %c0_117 = arith.constant 0 : index
    %c0_118 = arith.constant 0 : index
    %129 = vector.load %arg6[%c0_116, %c0_117, %c0_118] : memref<3x32x32xbf16, #tpu.memory_space<vmem>>, vector<1x32x32xbf16>
    %130 = vector.shape_cast %129 : vector<1x32x32xbf16> to vector<32x32xbf16>
    %cst_119 = arith.constant dense<0.000000e+00> : vector<32x32xf32>
    %131 = tpu.matmul %128, %130, %cst_119 {dimension_numbers = #tpu.dot_dimension_numbers<[1], [0], [0], [1], [0, 0, 1, 1], [], []>} : vector<32x32xbf16>, vector<32x32xbf16>, vector<32x32xf32> -> vector<32x32xf32>
    %132 = arith.addf %41, %131 : vector<32x32xf32>
    %133 = vector.shape_cast %132 : vector<32x32xf32> to vector<4x8x32xf32>
    %c0_120 = arith.constant 0 : index
    %c0_121 = arith.constant 0 : index
    %c0_122 = arith.constant 0 : index
    %134 = vector.load %arg7[%c0_120, %c0_121, %c0_122] : memref<4x24x32xf32, #tpu.memory_space<vmem>>, vector<4x8x32xf32>
    tpu.vector_store %arg7[%c0_120, %c0_121, %c0_122], %133 {strides = array<i32>} : memref<4x24x32xf32, #tpu.memory_space<vmem>>, vector<4x8x32xf32>,
    "tpu.trace_start"() <{level = 10 : i32, message = "bqd,bkd->bqk"}> : () -> ()
    %cst_123 = arith.constant dense<0.000000e+00> : vector<4x8x8xf32>
    %135 = tpu.matmul %52, %97, %cst_123 {dimension_numbers = #tpu.dot_dimension_numbers<[2], [2], [1], [1], [0, 0, 0, 1, 1, 1], [0], [0]>} : vector<4x8x32xbf16>, vector<4x8x32xbf16>, vector<4x8x8xf32> -> vector<4x8x8xf32>
    "tpu.trace_stop"() : () -> ()
    %cst_124 = arith.constant dense<0xFF800000> : vector<4x8xf32>
    %136 = vector.multi_reduction <maximumf>, %135, %cst_124 [2] : vector<4x8x8xf32> to vector<4x8xf32>
    %137 = vector.shape_cast %136 : vector<4x8xf32> to vector<4x8x1xf32>
    %138 = vector.broadcast %137 : vector<4x8x1xf32> to vector<4x8x8xf32>
    %139 = arith.subf %135, %138 : vector<4x8x8xf32>
    %140 = math.exp %139 : vector<4x8x8xf32>
    %cst_125 = arith.constant dense<0.000000e+00> : vector<4x8xf32>
    %141 = vector.multi_reduction <add>, %140, %cst_125 [2] : vector<4x8x8xf32> to vector<4x8xf32>
    %142 = vector.shape_cast %141 : vector<4x8xf32> to vector<4x8x1xf32>
    %143 = tpu.reciprocal %142 {approx = true} : vector<4x8x1xf32> -> vector<4x8x1xf32>
    %144 = vector.broadcast %143 : vector<4x8x1xf32> to vector<4x8x8xf32>
    %145 = arith.mulf %140, %144 : vector<4x8x8xf32>
    %146 = arith.truncf %145 : vector<4x8x8xf32> to vector<4x8x8xbf16>
    "tpu.trace_start"() <{level = 10 : i32, message = "bqk,bkd->bqd"}> : () -> ()
    %cst_126 = arith.constant dense<0.000000e+00> : vector<4x8x32xf32>
    %147 = tpu.matmul %146, %106, %cst_126 {dimension_numbers = #tpu.dot_dimension_numbers<[2], [1], [1], [2], [0, 0, 0, 1, 1, 2], [0], [0]>} : vector<4x8x8xbf16>, vector<4x8x32xbf16>, vector<4x8x32xf32> -> vector<4x8x32xf32>
    "tpu.trace_stop"() : () -> ()
    %148 = vector.shape_cast %147 : vector<4x8x32xf32> to vector<32x32xf32>
    %149 = arith.truncf %148 : vector<32x32xf32> to vector<32x32xbf16>
    %c1_127 = arith.constant 1 : index
    %c0_128 = arith.constant 0 : index
    %c0_129 = arith.constant 0 : index
    %150 = vector.load %arg6[%c1_127, %c0_128, %c0_129] : memref<3x32x32xbf16, #tpu.memory_space<vmem>>, vector<1x32x32xbf16>
    %151 = vector.shape_cast %150 : vector<1x32x32xbf16> to vector<32x32xbf16>
    %cst_130 = arith.constant dense<0.000000e+00> : vector<32x32xf32>
    %152 = tpu.matmul %149, %151, %cst_130 {dimension_numbers = #tpu.dot_dimension_numbers<[1], [0], [0], [1], [0, 0, 1, 1], [], []>} : vector<32x32xbf16>, vector<32x32xbf16>, vector<32x32xf32> -> vector<32x32xf32>
    %153 = arith.addf %77, %152 : vector<32x32xf32>
    %154 = vector.shape_cast %153 : vector<32x32xf32> to vector<4x8x32xf32>
    %c0_131 = arith.constant 0 : index
    %c8 = arith.constant 8 : index
    %c0_132 = arith.constant 0 : index
    %155 = vector.load %arg7[%c0_131, %c8, %c0_132] : memref<4x24x32xf32, #tpu.memory_space<vmem>>, vector<4x8x32xf32>
    tpu.vector_store %arg7[%c0_131, %c8, %c0_132], %154 {strides = array<i32>} : memref<4x24x32xf32, #tpu.memory_space<vmem>>, vector<4x8x32xf32>,
    "tpu.trace_start"() <{level = 10 : i32, message = "bqd,bkd->bqk"}> : () -> ()
    %cst_133 = arith.constant dense<0.000000e+00> : vector<4x8x8xf32>
    %156 = tpu.matmul %88, %25, %cst_133 {dimension_numbers = #tpu.dot_dimension_numbers<[2], [2], [1], [1], [0, 0, 0, 1, 1, 1], [0], [0]>} : vector<4x8x32xbf16>, vector<4x8x32xbf16>, vector<4x8x8xf32> -> vector<4x8x8xf32>
    "tpu.trace_stop"() : () -> ()
    %cst_134 = arith.constant dense<0xFF800000> : vector<4x8xf32>
    %157 = vector.multi_reduction <maximumf>, %156, %cst_134 [2] : vector<4x8x8xf32> to vector<4x8xf32>
    %158 = vector.shape_cast %157 : vector<4x8xf32> to vector<4x8x1xf32>
    %159 = vector.broadcast %158 : vector<4x8x1xf32> to vector<4x8x8xf32>
    %160 = arith.subf %156, %159 : vector<4x8x8xf32>
    %161 = math.exp %160 : vector<4x8x8xf32>
    %cst_135 = arith.constant dense<0.000000e+00> : vector<4x8xf32>
    %162 = vector.multi_reduction <add>, %161, %cst_135 [2] : vector<4x8x8xf32> to vector<4x8xf32>
    %163 = vector.shape_cast %162 : vector<4x8xf32> to vector<4x8x1xf32>
    %164 = tpu.reciprocal %163 {approx = true} : vector<4x8x1xf32> -> vector<4x8x1xf32>
    %165 = vector.broadcast %164 : vector<4x8x1xf32> to vector<4x8x8xf32>
    %166 = arith.mulf %161, %165 : vector<4x8x8xf32>
    %167 = arith.truncf %166 : vector<4x8x8xf32> to vector<4x8x8xbf16>
    "tpu.trace_start"() <{level = 10 : i32, message = "bqk,bkd->bqd"}> : () -> ()
    %cst_136 = arith.constant dense<0.000000e+00> : vector<4x8x32xf32>
    %168 = tpu.matmul %167, %34, %cst_136 {dimension_numbers = #tpu.dot_dimension_numbers<[2], [1], [1], [2], [0, 0, 0, 1, 1, 2], [0], [0]>} : vector<4x8x8xbf16>, vector<4x8x32xbf16>, vector<4x8x32xf32> -> vector<4x8x32xf32>
    "tpu.trace_stop"() : () -> ()
    %169 = vector.shape_cast %168 : vector<4x8x32xf32> to vector<32x32xf32>
    %170 = arith.truncf %169 : vector<32x32xf32> to vector<32x32xbf16>
    %c2_137 = arith.constant 2 : index
    %c0_138 = arith.constant 0 : index
    %c0_139 = arith.constant 0 : index
    %171 = vector.load %arg6[%c2_137, %c0_138, %c0_139] : memref<3x32x32xbf16, #tpu.memory_space<vmem>>, vector<1x32x32xbf16>
    %172 = vector.shape_cast %171 : vector<1x32x32xbf16> to vector<32x32xbf16>
    %cst_140 = arith.constant dense<0.000000e+00> : vector<32x32xf32>
    %173 = tpu.matmul %170, %172, %cst_140 {dimension_numbers = #tpu.dot_dimension_numbers<[1], [0], [0], [1], [0, 0, 1, 1], [], []>} : vector<32x32xbf16>, vector<32x32xbf16>, vector<32x32xf32> -> vector<32x32xf32>
    %174 = arith.addf %113, %173 : vector<32x32xf32>
    %175 = vector.shape_cast %174 : vector<32x32xf32> to vector<4x8x32xf32>
    %c0_141 = arith.constant 0 : index
    %c16 = arith.constant 16 : index
    %c0_142 = arith.constant 0 : index
    %176 = vector.load %arg7[%c0_141, %c16, %c0_142] : memref<4x24x32xf32, #tpu.memory_space<vmem>>, vector<4x8x32xf32>
    tpu.vector_store %arg7[%c0_141, %c16, %c0_142], %175 {strides = array<i32>} : memref<4x24x32xf32, #tpu.memory_space<vmem>>, vector<4x8x32xf32>,
    return
  }
  func.func @transform_0(%arg0: i32) -> (i32, i32) {
    %c0_i32 = arith.constant 0 : i32
    %c0_i32_0 = arith.constant 0 : i32
    return %arg0, %c0_i32 : i32, i32
  }
  func.func @transform_1(%arg0: i32) -> (i32, i32) {
    %c0_i32 = arith.constant 0 : i32
    %c0_i32_0 = arith.constant 0 : i32
    return %arg0, %c0_i32 : i32, i32
  }
  func.func @transform_2(%arg0: i32) -> (i32, i32) {
    %c0_i32 = arith.constant 0 : i32
    %c0_i32_0 = arith.constant 0 : i32
    return %arg0, %c0_i32 : i32, i32
  }
  func.func @transform_3(%arg0: i32) -> (i32, i32, i32, i32) {
    %c0_i32 = arith.constant 0 : i32
    %c0_i32_0 = arith.constant 0 : i32
    %c0_i32_1 = arith.constant 0 : i32
    %c0_i32_2 = arith.constant 0 : i32
    %c0_i32_3 = arith.constant 0 : i32
    return %c0_i32, %c0_i32_0, %c0_i32_1, %c0_i32_2 : i32, i32, i32, i32
  }
  func.func @transform_4(%arg0: i32) -> (i32, i32, i32, i32) {
    %c0_i32 = arith.constant 0 : i32
    %c0_i32_0 = arith.constant 0 : i32
    %c0_i32_1 = arith.constant 0 : i32
    %c0_i32_2 = arith.constant 0 : i32
    %c0_i32_3 = arith.constant 0 : i32
    return %c0_i32, %c0_i32_0, %c0_i32_1, %c0_i32_2 : i32, i32, i32, i32
  }
  func.func @transform_5(%arg0: i32) -> (i32, i32, i32) {
    %c0_i32 = arith.constant 0 : i32
    %c0_i32_0 = arith.constant 0 : i32
    %c0_i32_1 = arith.constant 0 : i32
    %c0_i32_2 = arith.constant 0 : i32
    return %c0_i32, %c0_i32_0, %c0_i32_1 : i32, i32, i32
  }
  func.func @transform_6(%arg0: i32) -> (i32, i32, i32) {
    %c0_i32 = arith.constant 0 : i32
    %c0_i32_0 = arith.constant 0 : i32
    %c0_i32_1 = arith.constant 0 : i32
    return %arg0, %c0_i32, %c0_i32_0 : i32, i32, i32
  }
}

</mosaic_0001>

<llo_original>
// kernel: trimodal_cross_attention.1
$region0: #{trimodal_cross_attention.1}
  #allocation0 [shape = 'u32[]', space=smem, size = 0x4, offset = 0x4, fixed_abs, tag = 'smem constant byte address 0x4 - core index']
  #allocation1 [shape = 'u32[144,128]{1,0:T(1,128)}', space=vmem, size = 0x12000, scoped, tag = 'internal scratch']
  %s0 = inlined_call_operand.vmem [shape: f32[32,32], index: 0, kind: input, shape index: {}]
  %s1 = inlined_call_operand.vmem [shape: f32[32,32], index: 1, kind: input, shape index: {}]
  %s2 = inlined_call_operand.vmem [shape: f32[32,32], index: 2, kind: input, shape index: {}]
  %s3 = inlined_call_operand.vmem [shape: bf16[3,4,32,32], index: 3, kind: input, shape index: {}]
  %s4 = inlined_call_operand.vmem [shape: f32[3,4,1,32], index: 4, kind: input, shape index: {}]
  %s5 = inlined_call_operand.vmem [shape: bf16[3,32,32], index: 5, kind: input, shape index: {}]
  %s6 = inlined_call_operand.vmem [shape: f32[4,24,32], index: 6, kind: output, shape index: {}]
  %s7 = sld [smem:[#allocation0]]
  $region34: #{trimodal_cross_attention.1} parent=0
    _
  %s9 = ssub.s32 1, %s7
  %s10 = scalar_select 0, %s9, %s7
  // Predicated region
  $region2: #{trimodal_cross_attention.1} parent=0 // pred_check
    _
  $region3: #{trimodal_cross_attention.1} parent=0 // pred_check_branch
    %12 = sbr.rel (0) target = $region5
  $region4: #{trimodal_cross_attention.1} parent=0 // pred_region
    _
  $region5: #{trimodal_cross_attention.1} parent=0 // pred_fallthru
    _
  // Predicated region
  $region6: #{trimodal_cross_attention.1} parent=0 // pred_check
    _
  $region7: #{trimodal_cross_attention.1} parent=0 // pred_check_branch
    %14 = sbr.rel (0) target = $region9
  $region8: #{trimodal_cross_attention.1} parent=0 // pred_region
    _
  $region9: #{trimodal_cross_attention.1} parent=0 // pred_fallthru
    _
  // Predicated region
  $region10: #{trimodal_cross_attention.1} parent=0 // pred_check
    _
  $region11: #{trimodal_cross_attention.1} parent=0 // pred_check_branch
    %16 = sbr.rel (0) target = $region13
  $region12: #{trimodal_cross_attention.1} parent=0 // pred_region
    _
  $region13: #{trimodal_cross_attention.1} parent=0 // pred_fallthru
    _
  // Predicated region
  $region14: #{trimodal_cross_attention.1} parent=0 // pred_check
    _
  $region15: #{trimodal_cross_attention.1} parent=0 // pred_check_branch
    %18 = sbr.rel (0) target = $region17
  $region16: #{trimodal_cross_attention.1} parent=0 // pred_region
    _
  $region17: #{trimodal_cross_attention.1} parent=0 // pred_fallthru
    _
  // Predicated region
  $region18: #{trimodal_cross_attention.1} parent=0 // pred_check
    _
  $region19: #{trimodal_cross_attention.1} parent=0 // pred_check_branch
    %20 = sbr.rel (0) target = $region21
  $region20: #{trimodal_cross_attention.1} parent=0 // pred_region
    _
  $region21: #{trimodal_cross_attention.1} parent=0 // pred_fallthru
    _
  // Predicated region
  $region22: #{trimodal_cross_attention.1} parent=0 // pred_check
    _
  $region23: #{trimodal_cross_attention.1} parent=0 // pred_check_branch
    %22 = sbr.rel (0) target = $region25
  $region24: #{trimodal_cross_attention.1} parent=0 // pred_region
    _
  $region25: #{trimodal_cross_attention.1} parent=0 // pred_fallthru
    _
  %v24 = vld [vmem:[%s0] sm:$0xff]
  %v25 = vld [vmem:[%s0 + $0x8] sm:$0xff]
  %v26 = vld [vmem:[%s0 + $0x10] sm:$0xff]
  %v27 = vld [vmem:[%s0 + $0x18] sm:$0xff]
  %v28 = vpack.c.bf16 %v25, %v24
  %v29 = vpack.c.bf16 %v27, %v26
  %v30 = vld [vmem:[%s1] sm:$0xff]
  %v31 = vld [vmem:[%s1 + $0x8] sm:$0xff]
  %v32 = vld [vmem:[%s1 + $0x10] sm:$0xff]
  %v33 = vld [vmem:[%s1 + $0x18] sm:$0xff]
  %v34 = vpack.c.bf16 %v31, %v30
  %v35 = vpack.c.bf16 %v33, %v32
  %v36 = vld [vmem:[%s2] sm:$0xff]
  %v37 = vld [vmem:[%s2 + $0x8] sm:$0xff]
  %v38 = vld [vmem:[%s2 + $0x10] sm:$0xff]
  %v39 = vld [vmem:[%s2 + $0x18] sm:$0xff]
  %v40 = vpack.c.bf16 %v37, %v36
  %v41 = vpack.c.bf16 %v39, %v38
  %v42 = vld [vmem:[%s3] sm:$0xf]
  %v43 = vld [vmem:[%s3 + $0x4] sm:$0xf]
  %v44 = vld [vmem:[%s3 + $0x8] sm:$0xf]
  %v45 = vld [vmem:[%s3 + $0xc] sm:$0xf]
  %v46 = vld [vmem:[%s4] sm:$0x1]
  %v48 = vlaneseq
  %v49 = vshrl.u32 %v48, 7
  %v50 = vsub.s32 0, %v49
  %v51 = vrot.slane %v46, %v50
  %v57 = vunpack.c.l.b16 %v42
  %v58 = vunpack.c.l.b16 %v43
  %v59 = vunpack.c.l.b16 %v44
  %v60 = vunpack.c.l.b16 %v45
  %v61 = vpack.c.b16 %v58, %v57
  %v62 = vpack.c.b16 %v60, %v59
  %vm65 = vcmask 261120
  %v67 = vsel %vm65, %v28, 0
  %v70 = vsel %vm65, %v29, 0
  %72 = vmatprep.subr.bf16.mxu0 0
  %73 = vmatpush1.bf16.msra.mxu0 0
  %74 = vmatprep.subr.bf16.mxu0 0
  %75 = vmatpush1.bf16.msra.mxu0 0
  %76 = vmatprep.subr.bf16.mxu0 0
  %77 = vmatpush1.bf16.msra.mxu0 0
  %78 = vmatprep.subr.bf16.mxu0 0
  %79 = vmatpush1.bf16.msra.mxu0 0
  %80 = vmatprep.subr.bf16.mxu0 0
  %81 = vmatpush1.bf16.msra.mxu0 0
  %82 = vmatprep.subr.bf16.mxu0 0
  %83 = vmatpush1.bf16.msra.mxu0 0
  %84 = vmatprep.subr.bf16.mxu0 0
  %85 = vmatpush1.bf16.msra.mxu0 %v62
  %86 = vmatprep.subr.bf16.mxu0 0
  %87 = vmatpush1.bf16.msra.mxu0 %v61
  %88 = vmatprep.subr.bf16.mxu0 0
  %89 = vmatpush2.bf16.msra.mxu0 0
  %90 = vmatprep.subr.bf16.mxu0 0
  %91 = vmatpush2.bf16.msra.mxu0 0
  %92 = vmatprep.subr.bf16.mxu0 0
  %93 = vmatpush2.bf16.msra.mxu0 0
  %94 = vmatprep.subr.bf16.mxu0 0
  %95 = vmatpush2.bf16.msra.mxu0 0
  %96 = vmatprep.subr.bf16.mxu0 0
  %97 = vmatpush2.bf16.msra.mxu0 0
  %98 = vmatprep.subr.bf16.mxu0 0
  %99 = vmatpush2.bf16.msra.mxu0 0
  %100 = vmatprep.subr.bf16.mxu0 0
  %101 = vmatpush2.bf16.msra.mxu0 0
  %102 = vmatprep.subr.bf16.mxu0 0
  %103 = vmatpush2.bf16.msra.mxu0 0
  %104 = vmatprep.mubr.bf16.mxu0 0
  %105 = vmatmul.mubr.bf16.gmra.mxu0 %v67
  %v106 = vpop.f32.mrf.mxu0
  %v107 = vadd.f32 %v51, %v106
  %v108 = vpop.f32.mrf.mxu0
  %v109 = vpop.f32.mrf.mxu0
  %v110 = vadd.f32 %v51, %v109
  %v111 = vpop.f32.mrf.mxu0
  %112 = vmatprep.mubr.bf16.mxu0 0
  %113 = vmatmul.mubr.bf16.gmra.mxu0 %v70
  %v114 = vpop.f32.mrf.mxu0
  %v115 = vadd.f32 %v51, %v114
  %v116 = vpop.f32.mrf.mxu0
  %v117 = vpop.f32.mrf.mxu0
  %v118 = vadd.f32 %v51, %v117
  %v119 = vpop.f32.mrf.mxu0
  %120 = vdwg.mxu0
  %v121 = vmul.f32 %v107, 0.17677669
  %v122 = vmul.f32 %v110, 0.17677669
  %v123 = vmul.f32 %v115, 0.17677669
  %v124 = vmul.f32 %v118, 0.17677669
  %v125 = vpack.c.bf16 %v122, %v121
  %v126 = vpack.c.bf16 %v124, %v123
  %v129 = vunpack.c.l.b16 %v125
  %v130 = vunpack.c.h.b16 %v125
  %v131 = vunpack.c.l.b16 %v126
  %v132 = vunpack.c.h.b16 %v126
  %v133 = vpack.c.b16 %v129, %v129
  %v134 = vpack.c.b16 %v130, %v130
  %v135 = vpack.c.b16 %v131, %v131
  %v136 = vpack.c.b16 %v132, %v132
  %s137 = scalar_lea.vmem %s3, 16
  %v138 = vld [vmem:[%s137] sm:$0xf]
  %v139 = vld [vmem:[%s137 + $0x4] sm:$0xf]
  %v140 = vld [vmem:[%s137 + $0x8] sm:$0xf]
  %v141 = vld [vmem:[%s137 + $0xc] sm:$0xf]
  %s142 = scalar_lea.vmem %s4, 1
  %v143 = vld [vmem:[%s142] sm:$0x1]
  %v145 = vlaneseq
  %v146 = vshrl.u32 %v145, 7
  %v147 = vsub.s32 0, %v146
  %v148 = vrot.slane %v143, %v147
  %v154 = vunpack.c.l.b16 %v138
  %v155 = vunpack.c.l.b16 %v139
  %v156 = vunpack.c.l.b16 %v140
  %v157 = vunpack.c.l.b16 %v141
  %v158 = vpack.c.b16 %v155, %v154
  %v159 = vpack.c.b16 %v157, %v156
  %162 = vmatprep.subr.bf16.mxu0 0
  %163 = vmatpush1.bf16.msra.mxu0 0
  %164 = vmatprep.subr.bf16.mxu0 0
  %165 = vmatpush1.bf16.msra.mxu0 0
  %166 = vmatprep.subr.bf16.mxu0 0
  %167 = vmatpush1.bf16.msra.mxu0 0
  %168 = vmatprep.subr.bf16.mxu0 0
  %169 = vmatpush1.bf16.msra.mxu0 0
  %170 = vmatprep.subr.bf16.mxu0 0
  %171 = vmatpush1.bf16.msra.mxu0 0
  %172 = vmatprep.subr.bf16.mxu0 0
  %173 = vmatpush1.bf16.msra.mxu0 0
  %174 = vmatprep.subr.bf16.mxu0 0
  %175 = vmatpush1.bf16.msra.mxu0 %v159
  %176 = vmatprep.subr.bf16.mxu0 0
  %177 = vmatpush1.bf16.msra.mxu0 %v158
  %178 = vmatprep.subr.bf16.mxu0 0
  %179 = vmatpush2.bf16.msra.mxu0 0
  %180 = vmatprep.subr.bf16.mxu0 0
  %181 = vmatpush2.bf16.msra.mxu0 0
  %182 = vmatprep.subr.bf16.mxu0 0
  %183 = vmatpush2.bf16.msra.mxu0 0
  %184 = vmatprep.subr.bf16.mxu0 0
  %185 = vmatpush2.bf16.msra.mxu0 0
  %186 = vmatprep.subr.bf16.mxu0 0
  %187 = vmatpush2.bf16.msra.mxu0 0
  %188 = vmatprep.subr.bf16.mxu0 0
  %189 = vmatpush2.bf16.msra.mxu0 0
  %190 = vmatprep.subr.bf16.mxu0 0
  %191 = vmatpush2.bf16.msra.mxu0 0
  %192 = vmatprep.subr.bf16.mxu0 0
  %193 = vmatpush2.bf16.msra.mxu0 0
  %194 = vmatprep.mubr.bf16.mxu0 0
  %195 = vmatmul.mubr.bf16.gmra.mxu0 %v67
  %v196 = vpop.f32.mrf.mxu0
  %v197 = vadd.f32 %v148, %v196
  %v198 = vpop.f32.mrf.mxu0
  %v199 = vpop.f32.mrf.mxu0
  %v200 = vadd.f32 %v148, %v199
  %v201 = vpop.f32.mrf.mxu0
  %202 = vmatprep.mubr.bf16.mxu0 0
  %203 = vmatmul.mubr.bf16.gmra.mxu0 %v70
  %v204 = vpop.f32.mrf.mxu0
  %v205 = vadd.f32 %v148, %v204
  %v206 = vpop.f32.mrf.mxu0
  %v207 = vpop.f32.mrf.mxu0
  %v208 = vadd.f32 %v148, %v207
  %v209 = vpop.f32.mrf.mxu0
  %210 = vdwg.mxu0
  %v211 = vpack.c.bf16 %v200, %v197
  %v212 = vpack.c.bf16 %v208, %v205
  %v215 = vunpack.c.l.b16 %v211
  %v216 = vunpack.c.h.b16 %v211
  %v217 = vunpack.c.l.b16 %v212
  %v218 = vunpack.c.h.b16 %v212
  %v219 = vpack.c.b16 %v215, %v215
  %v220 = vpack.c.b16 %v216, %v216
  %v221 = vpack.c.b16 %v217, %v217
  %v222 = vpack.c.b16 %v218, %v218
  %s223 = scalar_lea.vmem %s3, 32
  %v224 = vld [vmem:[%s223] sm:$0xf]
  %v225 = vld [vmem:[%s223 + $0x4] sm:$0xf]
  %v226 = vld [vmem:[%s223 + $0x8] sm:$0xf]
  %v227 = vld [vmem:[%s223 + $0xc] sm:$0xf]
  %s228 = scalar_lea.vmem %s4, 2
  %v229 = vld [vmem:[%s228] sm:$0x1]
  %v231 = vlaneseq
  %v232 = vshrl.u32 %v231, 7
  %v233 = vsub.s32 0, %v232
  %v234 = vrot.slane %v229, %v233
  %v240 = vunpack.c.l.b16 %v224
  %v241 = vunpack.c.l.b16 %v225
  %v242 = vunpack.c.l.b16 %v226
  %v243 = vunpack.c.l.b16 %v227
  %v244 = vpack.c.b16 %v241, %v240
  %v245 = vpack.c.b16 %v243, %v242
  %248 = vmatprep.subr.bf16.mxu0 0
  %249 = vmatpush1.bf16.msra.mxu0 0
  %250 = vmatprep.subr.bf16.mxu0 0
  %251 = vmatpush1.bf16.msra.mxu0 0
  %252 = vmatprep.subr.bf16.mxu0 0
  %253 = vmatpush1.bf16.msra.mxu0 0
  %254 = vmatprep.subr.bf16.mxu0 0
  %255 = vmatpush1.bf16.msra.mxu0 0
  %256 = vmatprep.subr.bf16.mxu0 0
  %257 = vmatpush1.bf16.msra.mxu0 0
  %258 = vmatprep.subr.bf16.mxu0 0
  %259 = vmatpush1.bf16.msra.mxu0 0
  %260 = vmatprep.subr.bf16.mxu0 0
  %261 = vmatpush1.bf16.msra.mxu0 %v245
  %262 = vmatprep.subr.bf16.mxu0 0
  %263 = vmatpush1.bf16.msra.mxu0 %v244
  %264 = vmatprep.subr.bf16.mxu0 0
  %265 = vmatpush2.bf16.msra.mxu0 0
  %266 = vmatprep.subr.bf16.mxu0 0
  %267 = vmatpush2.bf16.msra.mxu0 0
  %268 = vmatprep.subr.bf16.mxu0 0
  %269 = vmatpush2.bf16.msra.mxu0 0
  %270 = vmatprep.subr.bf16.mxu0 0
  %271 = vmatpush2.bf16.msra.mxu0 0
  %272 = vmatprep.subr.bf16.mxu0 0
  %273 = vmatpush2.bf16.msra.mxu0 0
  %274 = vmatprep.subr.bf16.mxu0 0
  %275 = vmatpush2.bf16.msra.mxu0 0
  %276 = vmatprep.subr.bf16.mxu0 0
  %277 = vmatpush2.bf16.msra.mxu0 0
  %278 = vmatprep.subr.bf16.mxu0 0
  %279 = vmatpush2.bf16.msra.mxu0 0
  %280 = vmatprep.mubr.bf16.mxu0 0
  %281 = vmatmul.mubr.bf16.gmra.mxu0 %v67
  %v282 = vpop.f32.mrf.mxu0
  %v283 = vadd.f32 %v234, %v282
  %v284 = vpop.f32.mrf.mxu0
  %v285 = vpop.f32.mrf.mxu0
  %v286 = vadd.f32 %v234, %v285
  %v287 = vpop.f32.mrf.mxu0
  %288 = vmatprep.mubr.bf16.mxu0 0
  %289 = vmatmul.mubr.bf16.gmra.mxu0 %v70
  %v290 = vpop.f32.mrf.mxu0
  %v291 = vadd.f32 %v234, %v290
  %v292 = vpop.f32.mrf.mxu0
  %v293 = vpop.f32.mrf.mxu0
  %v294 = vadd.f32 %v234, %v293
  %v295 = vpop.f32.mrf.mxu0
  %296 = vdwg.mxu0
  %v297 = vpack.c.bf16 %v286, %v283
  %v298 = vpack.c.bf16 %v294, %v291
  %v301 = vunpack.c.l.b16 %v297
  %v302 = vunpack.c.h.b16 %v297
  %v303 = vunpack.c.l.b16 %v298
  %v304 = vunpack.c.h.b16 %v298
  %v305 = vpack.c.b16 %v301, %v301
  %v306 = vpack.c.b16 %v302, %v302
  %v307 = vpack.c.b16 %v303, %v303
  %v308 = vpack.c.b16 %v304, %v304
  %s309 = scalar_lea.vmem %s3, 48
  %v310 = vld [vmem:[%s309] sm:$0xf]
  %v311 = vld [vmem:[%s309 + $0x4] sm:$0xf]
  %v312 = vld [vmem:[%s309 + $0x8] sm:$0xf]
  %v313 = vld [vmem:[%s309 + $0xc] sm:$0xf]
  %s314 = scalar_lea.vmem %s4, 3
  %v315 = vld [vmem:[%s314] sm:$0x1]
  %v317 = vlaneseq
  %v318 = vshrl.u32 %v317, 7
  %v319 = vsub.s32 0, %v318
  %v320 = vrot.slane %v315, %v319
  %v326 = vunpack.c.l.b16 %v310
  %v327 = vunpack.c.l.b16 %v311
  %v328 = vunpack.c.l.b16 %v312
  %v329 = vunpack.c.l.b16 %v313
  %v330 = vpack.c.b16 %v327, %v326
  %v331 = vpack.c.b16 %v329, %v328
  %334 = vmatprep.subr.bf16.mxu0 0
  %335 = vmatpush1.bf16.msra.mxu0 0
  %336 = vmatprep.subr.bf16.mxu0 0
  %337 = vmatpush1.bf16.msra.mxu0 0
  %338 = vmatprep.subr.bf16.mxu0 0
  %339 = vmatpush1.bf16.msra.mxu0 0
  %340 = vmatprep.subr.bf16.mxu0 0
  %341 = vmatpush1.bf16.msra.mxu0 0
  %342 = vmatprep.subr.bf16.mxu0 0
  %343 = vmatpush1.bf16.msra.mxu0 0
  %344 = vmatprep.subr.bf16.mxu0 0
  %345 = vmatpush1.bf16.msra.mxu0 0
  %346 = vmatprep.subr.bf16.mxu0 0
  %347 = vmatpush1.bf16.msra.mxu0 %v331
  %348 = vmatprep.subr.bf16.mxu0 0
  %349 = vmatpush1.bf16.msra.mxu0 %v330
  %350 = vmatprep.subr.bf16.mxu0 0
  %351 = vmatpush2.bf16.msra.mxu0 0
  %352 = vmatprep.subr.bf16.mxu0 0
  %353 = vmatpush2.bf16.msra.mxu0 0
  %354 = vmatprep.subr.bf16.mxu0 0
  %355 = vmatpush2.bf16.msra.mxu0 0
  %356 = vmatprep.subr.bf16.mxu0 0
  %357 = vmatpush2.bf16.msra.mxu0 0
  %358 = vmatprep.subr.bf16.mxu0 0
  %359 = vmatpush2.bf16.msra.mxu0 0
  %360 = vmatprep.subr.bf16.mxu0 0
  %361 = vmatpush2.bf16.msra.mxu0 0
  %362 = vmatprep.subr.bf16.mxu0 0
  %363 = vmatpush2.bf16.msra.mxu0 0
  %364 = vmatprep.subr.bf16.mxu0 0
  %365 = vmatpush2.bf16.msra.mxu0 0
  %366 = vmatprep.mubr.bf16.mxu0 0
  %367 = vmatmul.mubr.bf16.gmra.mxu0 %v67
  %v368 = vpop.f32.mrf.mxu0
  %v369 = vadd.f32 %v320, %v368
  %v370 = vpop.f32.mrf.mxu0
  %v371 = vpop.f32.mrf.mxu0
  %v372 = vadd.f32 %v320, %v371
  %v373 = vpop.f32.mrf.mxu0
  %374 = vmatprep.mubr.bf16.mxu0 0
  %375 = vmatmul.mubr.bf16.gmra.mxu0 %v70
  %v376 = vpop.f32.mrf.mxu0
  %v377 = vadd.f32 %v320, %v376
  %v378 = vpop.f32.mrf.mxu0
  %v379 = vpop.f32.mrf.mxu0
  %v380 = vadd.f32 %v320, %v379
  %v381 = vpop.f32.mrf.mxu0
  %382 = vdwg.mxu0
  %s383 = scalar_lea.vmem %s3, 64
  %v384 = vld [vmem:[%s383] sm:$0xf]
  %v385 = vld [vmem:[%s383 + $0x4] sm:$0xf]
  %v386 = vld [vmem:[%s383 + $0x8] sm:$0xf]
  %v387 = vld [vmem:[%s383 + $0xc] sm:$0xf]
  %s388 = scalar_lea.vmem %s4, 4
  %v389 = vld [vmem:[%s388] sm:$0x1]
  %v391 = vlaneseq
  %v392 = vshrl.u32 %v391, 7
  %v393 = vsub.s32 0, %v392
  %v394 = vrot.slane %v389, %v393
  %v400 = vunpack.c.l.b16 %v384
  %v401 = vunpack.c.l.b16 %v385
  %v402 = vunpack.c.l.b16 %v386
  %v403 = vunpack.c.l.b16 %v387
  %v404 = vpack.c.b16 %v401, %v400
  %v405 = vpack.c.b16 %v403, %v402
  %v409 = vsel %vm65, %v34, 0
  %v412 = vsel %vm65, %v35, 0
  %414 = vmatprep.subr.bf16.mxu0 0
  %415 = vmatpush1.bf16.msra.mxu0 0
  %416 = vmatprep.subr.bf16.mxu0 0
  %417 = vmatpush1.bf16.msra.mxu0 0
  %418 = vmatprep.subr.bf16.mxu0 0
  %419 = vmatpush1.bf16.msra.mxu0 0
  %420 = vmatprep.subr.bf16.mxu0 0
  %421 = vmatpush1.bf16.msra.mxu0 0
  %422 = vmatprep.subr.bf16.mxu0 0
  %423 = vmatpush1.bf16.msra.mxu0 0
  %424 = vmatprep.subr.bf16.mxu0 0
  %425 = vmatpush1.bf16.msra.mxu0 0
  %426 = vmatprep.subr.bf16.mxu0 0
  %427 = vmatpush1.bf16.msra.mxu0 %v405
  %428 = vmatprep.subr.bf16.mxu0 0
  %429 = vmatpush1.bf16.msra.mxu0 %v404
  %430 = vmatprep.subr.bf16.mxu0 0
  %431 = vmatpush2.bf16.msra.mxu0 0
  %432 = vmatprep.subr.bf16.mxu0 0
  %433 = vmatpush2.bf16.msra.mxu0 0
  %434 = vmatprep.subr.bf16.mxu0 0
  %435 = vmatpush2.bf16.msra.mxu0 0
  %436 = vmatprep.subr.bf16.mxu0 0
  %437 = vmatpush2.bf16.msra.mxu0 0
  %438 = vmatprep.subr.bf16.mxu0 0
  %439 = vmatpush2.bf16.msra.mxu0 0
  %440 = vmatprep.subr.bf16.mxu0 0
  %441 = vmatpush2.bf16.msra.mxu0 0
  %442 = vmatprep.subr.bf16.mxu0 0
  %443 = vmatpush2.bf16.msra.mxu0 0
  %444 = vmatprep.subr.bf16.mxu0 0
  %445 = vmatpush2.bf16.msra.mxu0 0
  %446 = vmatprep.mubr.bf16.mxu0 0
  %447 = vmatmul.mubr.bf16.gmra.mxu0 %v409
  %v448 = vpop.f32.mrf.mxu0
  %v449 = vadd.f32 %v394, %v448
  %v450 = vpop.f32.mrf.mxu0
  %v451 = vpop.f32.mrf.mxu0
  %v452 = vadd.f32 %v394, %v451
  %v453 = vpop.f32.mrf.mxu0
  %454 = vmatprep.mubr.bf16.mxu0 0
  %455 = vmatmul.mubr.bf16.gmra.mxu0 %v412
  %v456 = vpop.f32.mrf.mxu0
  %v457 = vadd.f32 %v394, %v456
  %v458 = vpop.f32.mrf.mxu0
  %v459 = vpop.f32.mrf.mxu0
  %v460 = vadd.f32 %v394, %v459
  %v461 = vpop.f32.mrf.mxu0
  %462 = vdwg.mxu0
  %v463 = vmul.f32 %v449, 0.17677669
  %v464 = vmul.f32 %v452, 0.17677669
  %v465 = vmul.f32 %v457, 0.17677669
  %v466 = vmul.f32 %v460, 0.17677669
  %v467 = vpack.c.bf16 %v464, %v463
  %v468 = vpack.c.bf16 %v466, %v465
  %v471 = vunpack.c.l.b16 %v467
  %v472 = vunpack.c.h.b16 %v467
  %v473 = vunpack.c.l.b16 %v468
  %v474 = vunpack.c.h.b16 %v468
  %v475 = vpack.c.b16 %v471, %v471
  %v476 = vpack.c.b16 %v472, %v472
  %v477 = vpack.c.b16 %v473, %v473
  %v478 = vpack.c.b16 %v474, %v474
  %s479 = scalar_lea.vmem %s3, 80
  %v480 = vld [vmem:[%s479] sm:$0xf]
  %v481 = vld [vmem:[%s479 + $0x4] sm:$0xf]
  %v482 = vld [vmem:[%s479 + $0x8] sm:$0xf]
  %v483 = vld [vmem:[%s479 + $0xc] sm:$0xf]
  %s484 = scalar_lea.vmem %s4, 5
  %v485 = vld [vmem:[%s484] sm:$0x1]
  %v487 = vlaneseq
  %v488 = vshrl.u32 %v487, 7
  %v489 = vsub.s32 0, %v488
  %v490 = vrot.slane %v485, %v489
  %v496 = vunpack.c.l.b16 %v480
  %v497 = vunpack.c.l.b16 %v481
  %v498 = vunpack.c.l.b16 %v482
  %v499 = vunpack.c.l.b16 %v483
  %v500 = vpack.c.b16 %v497, %v496
  %v501 = vpack.c.b16 %v499, %v498
  %504 = vmatprep.subr.bf16.mxu0 0
  %505 = vmatpush1.bf16.msra.mxu0 0
  %506 = vmatprep.subr.bf16.mxu0 0
  %507 = vmatpush1.bf16.msra.mxu0 0
  %508 = vmatprep.subr.bf16.mxu0 0
  %509 = vmatpush1.bf16.msra.mxu0 0
  %510 = vmatprep.subr.bf16.mxu0 0
  %511 = vmatpush1.bf16.msra.mxu0 0
  %512 = vmatprep.subr.bf16.mxu0 0
  %513 = vmatpush1.bf16.msra.mxu0 0
  %514 = vmatprep.subr.bf16.mxu0 0
  %515 = vmatpush1.bf16.msra.mxu0 0
  %516 = vmatprep.subr.bf16.mxu0 0
  %517 = vmatpush1.bf16.msra.mxu0 %v501
  %518 = vmatprep.subr.bf16.mxu0 0
  %519 = vmatpush1.bf16.msra.mxu0 %v500
  %520 = vmatprep.subr.bf16.mxu0 0
  %521 = vmatpush2.bf16.msra.mxu0 0
  %522 = vmatprep.subr.bf16.mxu0 0
  %523 = vmatpush2.bf16.msra.mxu0 0
  %524 = vmatprep.subr.bf16.mxu0 0
  %525 = vmatpush2.bf16.msra.mxu0 0
  %526 = vmatprep.subr.bf16.mxu0 0
  %527 = vmatpush2.bf16.msra.mxu0 0
  %528 = vmatprep.subr.bf16.mxu0 0
  %529 = vmatpush2.bf16.msra.mxu0 0
  %530 = vmatprep.subr.bf16.mxu0 0
  %531 = vmatpush2.bf16.msra.mxu0 0
  %532 = vmatprep.subr.bf16.mxu0 0
  %533 = vmatpush2.bf16.msra.mxu0 0
  %534 = vmatprep.subr.bf16.mxu0 0
  %535 = vmatpush2.bf16.msra.mxu0 0
  %536 = vmatprep.mubr.bf16.mxu0 0
  %537 = vmatmul.mubr.bf16.gmra.mxu0 %v409
  %v538 = vpop.f32.mrf.mxu0
  %v539 = vadd.f32 %v490, %v538
  %v540 = vpop.f32.mrf.mxu0
  %v541 = vpop.f32.mrf.mxu0
  %v542 = vadd.f32 %v490, %v541
  %v543 = vpop.f32.mrf.mxu0
  %544 = vmatprep.mubr.bf16.mxu0 0
  %545 = vmatmul.mubr.bf16.gmra.mxu0 %v412
  %v546 = vpop.f32.mrf.mxu0
  %v547 = vadd.f32 %v490, %v546
  %v548 = vpop.f32.mrf.mxu0
  %v549 = vpop.f32.mrf.mxu0
  %v550 = vadd.f32 %v490, %v549
  %v551 = vpop.f32.mrf.mxu0
  %552 = vdwg.mxu0
  %v553 = vpack.c.bf16 %v542, %v539
  %v554 = vpack.c.bf16 %v550, %v547
  %v557 = vunpack.c.l.b16 %v553
  %v558 = vunpack.c.h.b16 %v553
  %v559 = vunpack.c.l.b16 %v554
  %v560 = vunpack.c.h.b16 %v554
  %v561 = vpack.c.b16 %v557, %v557
  %v562 = vpack.c.b16 %v558, %v558
  %v563 = vpack.c.b16 %v559, %v559
  %v564 = vpack.c.b16 %v560, %v560
  %s565 = scalar_lea.vmem %s3, 96
  %v566 = vld [vmem:[%s565] sm:$0xf]
  %v567 = vld [vmem:[%s565 + $0x4] sm:$0xf]
  %v568 = vld [vmem:[%s565 + $0x8] sm:$0xf]
  %v569 = vld [vmem:[%s565 + $0xc] sm:$0xf]
  %s570 = scalar_lea.vmem %s4, 6
  %v571 = vld [vmem:[%s570] sm:$0x1]
  %v573 = vlaneseq
  %v574 = vshrl.u32 %v573, 7
  %v575 = vsub.s32 0, %v574
  %v576 = vrot.slane %v571, %v575
  %v582 = vunpack.c.l.b16 %v566
  %v583 = vunpack.c.l.b16 %v567
  %v584 = vunpack.c.l.b16 %v568
  %v585 = vunpack.c.l.b16 %v569
  %v586 = vpack.c.b16 %v583, %v582
  %v587 = vpack.c.b16 %v585, %v584
  %590 = vmatprep.subr.bf16.mxu0 0
  %591 = vmatpush1.bf16.msra.mxu0 0
  %592 = vmatprep.subr.bf16.mxu0 0
  %593 = vmatpush1.bf16.msra.mxu0 0
  %594 = vmatprep.subr.bf16.mxu0 0
  %595 = vmatpush1.bf16.msra.mxu0 0
  %596 = vmatprep.subr.bf16.mxu0 0
  %597 = vmatpush1.bf16.msra.mxu0 0
  %598 = vmatprep.subr.bf16.mxu0 0
  %599 = vmatpush1.bf16.msra.mxu0 0
  %600 = vmatprep.subr.bf16.mxu0 0
  %601 = vmatpush1.bf16.msra.mxu0 0
  %602 = vmatprep.subr.bf16.mxu0 0
  %603 = vmatpush1.bf16.msra.mxu0 %v587
  %604 = vmatprep.subr.bf16.mxu0 0
  %605 = vmatpush1.bf16.msra.mxu0 %v586
  %606 = vmatprep.subr.bf16.mxu0 0
  %607 = vmatpush2.bf16.msra.mxu0 0
  %608 = vmatprep.subr.bf16.mxu0 0
  %609 = vmatpush2.bf16.msra.mxu0 0
  %610 = vmatprep.subr.bf16.mxu0 0
  %611 = vmatpush2.bf16.msra.mxu0 0
  %612 = vmatprep.subr.bf16.mxu0 0
  %613 = vmatpush2.bf16.msra.mxu0 0
  %614 = vmatprep.subr.bf16.mxu0 0
  %615 = vmatpush2.bf16.msra.mxu0 0
  %616 = vmatprep.subr.bf16.mxu0 0
  %617 = vmatpush2.bf16.msra.mxu0 0
  %618 = vmatprep.subr.bf16.mxu0 0
  %619 = vmatpush2.bf16.msra.mxu0 0
  %620 = vmatprep.subr.bf16.mxu0 0
  %621 = vmatpush2.bf16.msra.mxu0 0
  %622 = vmatprep.mubr.bf16.mxu0 0
  %623 = vmatmul.mubr.bf16.gmra.mxu0 %v409
  %v624 = vpop.f32.mrf.mxu0
  %v625 = vadd.f32 %v576, %v624
  %v626 = vpop.f32.mrf.mxu0
  %v627 = vpop.f32.mrf.mxu0
  %v628 = vadd.f32 %v576, %v627
  %v629 = vpop.f32.mrf.mxu0
  %630 = vmatprep.mubr.bf16.mxu0 0
  %631 = vmatmul.mubr.bf16.gmra.mxu0 %v412
  %v632 = vpop.f32.mrf.mxu0
  %v633 = vadd.f32 %v576, %v632
  %v634 = vpop.f32.mrf.mxu0
  %v635 = vpop.f32.mrf.mxu0
  %v636 = vadd.f32 %v576, %v635
  %v637 = vpop.f32.mrf.mxu0
  %638 = vdwg.mxu0
  %v639 = vpack.c.bf16 %v628, %v625
  %v640 = vpack.c.bf16 %v636, %v633
  %v643 = vunpack.c.l.b16 %v639
  %v644 = vunpack.c.h.b16 %v639
  %v645 = vunpack.c.l.b16 %v640
  %v646 = vunpack.c.h.b16 %v640
  %v647 = vpack.c.b16 %v643, %v643
  %v648 = vpack.c.b16 %v644, %v644
  %v649 = vpack.c.b16 %v645, %v645
  %v650 = vpack.c.b16 %v646, %v646
  %s651 = scalar_lea.vmem %s3, 112
  %v652 = vld [vmem:[%s651] sm:$0xf]
  %v653 = vld [vmem:[%s651 + $0x4] sm:$0xf]
  %v654 = vld [vmem:[%s651 + $0x8] sm:$0xf]
  %v655 = vld [vmem:[%s651 + $0xc] sm:$0xf]
  %s656 = scalar_lea.vmem %s4, 7
  %v657 = vld [vmem:[%s656] sm:$0x1]
  %v659 = vlaneseq
  %v660 = vshrl.u32 %v659, 7
  %v661 = vsub.s32 0, %v660
  %v662 = vrot.slane %v657, %v661
  %v668 = vunpack.c.l.b16 %v652
  %v669 = vunpack.c.l.b16 %v653
  %v670 = vunpack.c.l.b16 %v654
  %v671 = vunpack.c.l.b16 %v655
  %v672 = vpack.c.b16 %v669, %v668
  %v673 = vpack.c.b16 %v671, %v670
  %676 = vmatprep.subr.bf16.mxu0 0
  %677 = vmatpush1.bf16.msra.mxu0 0
  %678 = vmatprep.subr.bf16.mxu0 0
  %679 = vmatpush1.bf16.msra.mxu0 0
  %680 = vmatprep.subr.bf16.mxu0 0
  %681 = vmatpush1.bf16.msra.mxu0 0
  %682 = vmatprep.subr.bf16.mxu0 0
  %683 = vmatpush1.bf16.msra.mxu0 0
  %684 = vmatprep.subr.bf16.mxu0 0
  %685 = vmatpush1.bf16.msra.mxu0 0
  %686 = vmatprep.subr.bf16.mxu0 0
  %687 = vmatpush1.bf16.msra.mxu0 0
  %688 = vmatprep.subr.bf16.mxu0 0
  %689 = vmatpush1.bf16.msra.mxu0 %v673
  %690 = vmatprep.subr.bf16.mxu0 0
  %691 = vmatpush1.bf16.msra.mxu0 %v672
  %692 = vmatprep.subr.bf16.mxu0 0
  %693 = vmatpush2.bf16.msra.mxu0 0
  %694 = vmatprep.subr.bf16.mxu0 0
  %695 = vmatpush2.bf16.msra.mxu0 0
  %696 = vmatprep.subr.bf16.mxu0 0
  %697 = vmatpush2.bf16.msra.mxu0 0
  %698 = vmatprep.subr.bf16.mxu0 0
  %699 = vmatpush2.bf16.msra.mxu0 0
  %700 = vmatprep.subr.bf16.mxu0 0
  %701 = vmatpush2.bf16.msra.mxu0 0
  %702 = vmatprep.subr.bf16.mxu0 0
  %703 = vmatpush2.bf16.msra.mxu0 0
  %704 = vmatprep.subr.bf16.mxu0 0
  %705 = vmatpush2.bf16.msra.mxu0 0
  %706 = vmatprep.subr.bf16.mxu0 0
  %707 = vmatpush2.bf16.msra.mxu0 0
  %708 = vmatprep.mubr.bf16.mxu0 0
  %709 = vmatmul.mubr.bf16.gmra.mxu0 %v409
  %v710 = vpop.f32.mrf.mxu0
  %v711 = vadd.f32 %v662, %v710
  %v712 = vpop.f32.mrf.mxu0
  %v713 = vpop.f32.mrf.mxu0
  %v714 = vadd.f32 %v662, %v713
  %v715 = vpop.f32.mrf.mxu0
  %716 = vmatprep.mubr.bf16.mxu0 0
  %717 = vmatmul.mubr.bf16.gmra.mxu0 %v412
  %v718 = vpop.f32.mrf.mxu0
  %v719 = vadd.f32 %v662, %v718
  %v720 = vpop.f32.mrf.mxu0
  %v721 = vpop.f32.mrf.mxu0
  %v722 = vadd.f32 %v662, %v721
  %v723 = vpop.f32.mrf.mxu0
  %724 = vdwg.mxu0
  %s725 = scalar_lea.vmem %s3, 128
  %v726 = vld [vmem:[%s725] sm:$0xf]
  %v727 = vld [vmem:[%s725 + $0x4] sm:$0xf]
  %v728 = vld [vmem:[%s725 + $0x8] sm:$0xf]
  %v729 = vld [vmem:[%s725 + $0xc] sm:$0xf]
  %s730 = scalar_lea.vmem %s4, 8
  %v731 = vld [vmem:[%s730] sm:$0x1]
  %v733 = vlaneseq
  %v734 = vshrl.u32 %v733, 7
  %v735 = vsub.s32 0, %v734
  %v736 = vrot.slane %v731, %v735
  %v742 = vunpack.c.l.b16 %v726
  %v743 = vunpack.c.l.b16 %v727
  %v744 = vunpack.c.l.b16 %v728
  %v745 = vunpack.c.l.b16 %v729
  %v746 = vpack.c.b16 %v743, %v742
  %v747 = vpack.c.b16 %v745, %v744
  %v751 = vsel %vm65, %v40, 0
  %v754 = vsel %vm65, %v41, 0
  %756 = vmatprep.subr.bf16.mxu0 0
  %757 = vmatpush1.bf16.msra.mxu0 0
  %758 = vmatprep.subr.bf16.mxu0 0
  %759 = vmatpush1.bf16.msra.mxu0 0
  %760 = vmatprep.subr.bf16.mxu0 0
  %761 = vmatpush1.bf16.msra.mxu0 0
  %762 = vmatprep.subr.bf16.mxu0 0
  %763 = vmatpush1.bf16.msra.mxu0 0
  %764 = vmatprep.subr.bf16.mxu0 0
  %765 = vmatpush1.bf16.msra.mxu0 0
  %766 = vmatprep.subr.bf16.mxu0 0
  %767 = vmatpush1.bf16.msra.mxu0 0
  %768 = vmatprep.subr.bf16.mxu0 0
  %769 = vmatpush1.bf16.msra.mxu0 %v747
  %770 = vmatprep.subr.bf16.mxu0 0
  %771 = vmatpush1.bf16.msra.mxu0 %v746
  %772 = vmatprep.subr.bf16.mxu0 0
  %773 = vmatpush2.bf16.msra.mxu0 0
  %774 = vmatprep.subr.bf16.mxu0 0
  %775 = vmatpush2.bf16.msra.mxu0 0
  %776 = vmatprep.subr.bf16.mxu0 0
  %777 = vmatpush2.bf16.msra.mxu0 0
  %778 = vmatprep.subr.bf16.mxu0 0
  %779 = vmatpush2.bf16.msra.mxu0 0
  %780 = vmatprep.subr.bf16.mxu0 0
  %781 = vmatpush2.bf16.msra.mxu0 0
  %782 = vmatprep.subr.bf16.mxu0 0
  %783 = vmatpush2.bf16.msra.mxu0 0
  %784 = vmatprep.subr.bf16.mxu0 0
  %785 = vmatpush2.bf16.msra.mxu0 0
  %786 = vmatprep.subr.bf16.mxu0 0
  %787 = vmatpush2.bf16.msra.mxu0 0
  %788 = vmatprep.mubr.bf16.mxu0 0
  %789 = vmatmul.mubr.bf16.gmra.mxu0 %v751
  %v790 = vpop.f32.mrf.mxu0
  %v791 = vadd.f32 %v736, %v790
  %v792 = vpop.f32.mrf.mxu0
  %v793 = vpop.f32.mrf.mxu0
  %v794 = vadd.f32 %v736, %v793
  %v795 = vpop.f32.mrf.mxu0
  %796 = vmatprep.mubr.bf16.mxu0 0
  %797 = vmatmul.mubr.bf16.gmra.mxu0 %v754
  %v798 = vpop.f32.mrf.mxu0
  %v799 = vadd.f32 %v736, %v798
  %v800 = vpop.f32.mrf.mxu0
  %v801 = vpop.f32.mrf.mxu0
  %v802 = vadd.f32 %v736, %v801
  %v803 = vpop.f32.mrf.mxu0
  %804 = vdwg.mxu0
  %v805 = vmul.f32 %v791, 0.17677669
  %v806 = vmul.f32 %v794, 0.17677669
  %v807 = vmul.f32 %v799, 0.17677669
  %v808 = vmul.f32 %v802, 0.17677669
  %v809 = vpack.c.bf16 %v806, %v805
  %v810 = vpack.c.bf16 %v808, %v807
  %v813 = vunpack.c.l.b16 %v809
  %v814 = vunpack.c.h.b16 %v809
  %v815 = vunpack.c.l.b16 %v810
  %v816 = vunpack.c.h.b16 %v810
  %v817 = vpack.c.b16 %v813, %v813
  %v818 = vpack.c.b16 %v814, %v814
  %v819 = vpack.c.b16 %v815, %v815
  %v820 = vpack.c.b16 %v816, %v816
  %s821 = scalar_lea.vmem %s3, 144
  %v822 = vld [vmem:[%s821] sm:$0xf]
  %v823 = vld [vmem:[%s821 + $0x4] sm:$0xf]
  %v824 = vld [vmem:[%s821 + $0x8] sm:$0xf]
  %v825 = vld [vmem:[%s821 + $0xc] sm:$0xf]
  %s826 = scalar_lea.vmem %s4, 9
  %v827 = vld [vmem:[%s826] sm:$0x1]
  %v829 = vlaneseq
  %v830 = vshrl.u32 %v829, 7
  %v831 = vsub.s32 0, %v830
  %v832 = vrot.slane %v827, %v831
  %v838 = vunpack.c.l.b16 %v822
  %v839 = vunpack.c.l.b16 %v823
  %v840 = vunpack.c.l.b16 %v824
  %v841 = vunpack.c.l.b16 %v825
  %v842 = vpack.c.b16 %v839, %v838
  %v843 = vpack.c.b16 %v841, %v840
  %846 = vmatprep.subr.bf16.mxu0 0
  %847 = vmatpush1.bf16.msra.mxu0 0
  %848 = vmatprep.subr.bf16.mxu0 0
  %849 = vmatpush1.bf16.msra.mxu0 0
  %850 = vmatprep.subr.bf16.mxu0 0
  %851 = vmatpush1.bf16.msra.mxu0 0
  %852 = vmatprep.subr.bf16.mxu0 0
  %853 = vmatpush1.bf16.msra.mxu0 0
  %854 = vmatprep.subr.bf16.mxu0 0
  %855 = vmatpush1.bf16.msra.mxu0 0
  %856 = vmatprep.subr.bf16.mxu0 0
  %857 = vmatpush1.bf16.msra.mxu0 0
  %858 = vmatprep.subr.bf16.mxu0 0
  %859 = vmatpush1.bf16.msra.mxu0 %v843
  %860 = vmatprep.subr.bf16.mxu0 0
  %861 = vmatpush1.bf16.msra.mxu0 %v842
  %862 = vmatprep.subr.bf16.mxu0 0
  %863 = vmatpush2.bf16.msra.mxu0 0
  %864 = vmatprep.subr.bf16.mxu0 0
  %865 = vmatpush2.bf16.msra.mxu0 0
  %866 = vmatprep.subr.bf16.mxu0 0
  %867 = vmatpush2.bf16.msra.mxu0 0
  %868 = vmatprep.subr.bf16.mxu0 0
  %869 = vmatpush2.bf16.msra.mxu0 0
  %870 = vmatprep.subr.bf16.mxu0 0
  %871 = vmatpush2.bf16.msra.mxu0 0
  %872 = vmatprep.subr.bf16.mxu0 0
  %873 = vmatpush2.bf16.msra.mxu0 0
  %874 = vmatprep.subr.bf16.mxu0 0
  %875 = vmatpush2.bf16.msra.mxu0 0
  %876 = vmatprep.subr.bf16.mxu0 0
  %877 = vmatpush2.bf16.msra.mxu0 0
  %878 = vmatprep.mubr.bf16.mxu0 0
  %879 = vmatmul.mubr.bf16.gmra.mxu0 %v751
  %v880 = vpop.f32.mrf.mxu0
  %v881 = vadd.f32 %v832, %v880
  %v882 = vpop.f32.mrf.mxu0
  %v883 = vpop.f32.mrf.mxu0
  %v884 = vadd.f32 %v832, %v883
  %v885 = vpop.f32.mrf.mxu0
  %886 = vmatprep.mubr.bf16.mxu0 0
  %887 = vmatmul.mubr.bf16.gmra.mxu0 %v754
  %v888 = vpop.f32.mrf.mxu0
  %v889 = vadd.f32 %v832, %v888
  %v890 = vpop.f32.mrf.mxu0
  %v891 = vpop.f32.mrf.mxu0
  %v892 = vadd.f32 %v832, %v891
  %v893 = vpop.f32.mrf.mxu0
  %894 = vdwg.mxu0
  %v895 = vpack.c.bf16 %v884, %v881
  %v896 = vpack.c.bf16 %v892, %v889
  %v899 = vunpack.c.l.b16 %v895
  %v900 = vunpack.c.h.b16 %v895
  %v901 = vunpack.c.l.b16 %v896
  %v902 = vunpack.c.h.b16 %v896
  %v903 = vpack.c.b16 %v899, %v899
  %v904 = vpack.c.b16 %v900, %v900
  %v905 = vpack.c.b16 %v901, %v901
  %v906 = vpack.c.b16 %v902, %v902
  %s907 = scalar_lea.vmem %s3, 160
  %v908 = vld [vmem:[%s907] sm:$0xf]
  %v909 = vld [vmem:[%s907 + $0x4] sm:$0xf]
  %v910 = vld [vmem:[%s907 + $0x8] sm:$0xf]
  %v911 = vld [vmem:[%s907 + $0xc] sm:$0xf]
  %s912 = scalar_lea.vmem %s4, 10
  %v913 = vld [vmem:[%s912] sm:$0x1]
  %v915 = vlaneseq
  %v916 = vshrl.u32 %v915, 7
  %v917 = vsub.s32 0, %v916
  %v918 = vrot.slane %v913, %v917
  %v924 = vunpack.c.l.b16 %v908
  %v925 = vunpack.c.l.b16 %v909
  %v926 = vunpack.c.l.b16 %v910
  %v927 = vunpack.c.l.b16 %v911
  %v928 = vpack.c.b16 %v925, %v924
  %v929 = vpack.c.b16 %v927, %v926
  %932 = vmatprep.subr.bf16.mxu0 0
  %933 = vmatpush1.bf16.msra.mxu0 0
  %934 = vmatprep.subr.bf16.mxu0 0
  %935 = vmatpush1.bf16.msra.mxu0 0
  %936 = vmatprep.subr.bf16.mxu0 0
  %937 = vmatpush1.bf16.msra.mxu0 0
  %938 = vmatprep.subr.bf16.mxu0 0
  %939 = vmatpush1.bf16.msra.mxu0 0
  %940 = vmatprep.subr.bf16.mxu0 0
  %941 = vmatpush1.bf16.msra.mxu0 0
  %942 = vmatprep.subr.bf16.mxu0 0
  %943 = vmatpush1.bf16.msra.mxu0 0
  %944 = vmatprep.subr.bf16.mxu0 0
  %945 = vmatpush1.bf16.msra.mxu0 %v929
  %946 = vmatprep.subr.bf16.mxu0 0
  %947 = vmatpush1.bf16.msra.mxu0 %v928
  %948 = vmatprep.subr.bf16.mxu0 0
  %949 = vmatpush2.bf16.msra.mxu0 0
  %950 = vmatprep.subr.bf16.mxu0 0
  %951 = vmatpush2.bf16.msra.mxu0 0
  %952 = vmatprep.subr.bf16.mxu0 0
  %953 = vmatpush2.bf16.msra.mxu0 0
  %954 = vmatprep.subr.bf16.mxu0 0
  %955 = vmatpush2.bf16.msra.mxu0 0
  %956 = vmatprep.subr.bf16.mxu0 0
  %957 = vmatpush2.bf16.msra.mxu0 0
  %958 = vmatprep.subr.bf16.mxu0 0
  %959 = vmatpush2.bf16.msra.mxu0 0
  %960 = vmatprep.subr.bf16.mxu0 0
  %961 = vmatpush2.bf16.msra.mxu0 0
  %962 = vmatprep.subr.bf16.mxu0 0
  %963 = vmatpush2.bf16.msra.mxu0 0
  %964 = vmatprep.mubr.bf16.mxu0 0
  %965 = vmatmul.mubr.bf16.gmra.mxu0 %v751
  %v966 = vpop.f32.mrf.mxu0
  %v967 = vadd.f32 %v918, %v966
  %v968 = vpop.f32.mrf.mxu0
  %v969 = vpop.f32.mrf.mxu0
  %v970 = vadd.f32 %v918, %v969
  %v971 = vpop.f32.mrf.mxu0
  %972 = vmatprep.mubr.bf16.mxu0 0
  %973 = vmatmul.mubr.bf16.gmra.mxu0 %v754
  %v974 = vpop.f32.mrf.mxu0
  %v975 = vadd.f32 %v918, %v974
  %v976 = vpop.f32.mrf.mxu0
  %v977 = vpop.f32.mrf.mxu0
  %v978 = vadd.f32 %v918, %v977
  %v979 = vpop.f32.mrf.mxu0
  %980 = vdwg.mxu0
  %v981 = vpack.c.bf16 %v970, %v967
  %v982 = vpack.c.bf16 %v978, %v975
  %v985 = vunpack.c.l.b16 %v981
  %v986 = vunpack.c.h.b16 %v981
  %v987 = vunpack.c.l.b16 %v982
  %v988 = vunpack.c.h.b16 %v982
  %v989 = vpack.c.b16 %v985, %v985
  %v990 = vpack.c.b16 %v986, %v986
  %v991 = vpack.c.b16 %v987, %v987
  %v992 = vpack.c.b16 %v988, %v988
  %s993 = scalar_lea.vmem %s3, 176
  %v994 = vld [vmem:[%s993] sm:$0xf]
  %v995 = vld [vmem:[%s993 + $0x4] sm:$0xf]
  %v996 = vld [vmem:[%s993 + $0x8] sm:$0xf]
  %v997 = vld [vmem:[%s993 + $0xc] sm:$0xf]
  %s998 = scalar_lea.vmem %s4, 11
  %v999 = vld [vmem:[%s998] sm:$0x1]
  %v1001 = vlaneseq
  %v1002 = vshrl.u32 %v1001, 7
  %v1003 = vsub.s32 0, %v1002
  %v1004 = vrot.slane %v999, %v1003
  %v1010 = vunpack.c.l.b16 %v994
  %v1011 = vunpack.c.l.b16 %v995
  %v1012 = vunpack.c.l.b16 %v996
  %v1013 = vunpack.c.l.b16 %v997
  %v1014 = vpack.c.b16 %v1011, %v1010
  %v1015 = vpack.c.b16 %v1013, %v1012
  %1018 = vmatprep.subr.bf16.mxu0 0
  %1019 = vmatpush1.bf16.msra.mxu0 0
  %1020 = vmatprep.subr.bf16.mxu0 0
  %1021 = vmatpush1.bf16.msra.mxu0 0
  %1022 = vmatprep.subr.bf16.mxu0 0
  %1023 = vmatpush1.bf16.msra.mxu0 0
  %1024 = vmatprep.subr.bf16.mxu0 0
  %1025 = vmatpush1.bf16.msra.mxu0 0
  %1026 = vmatprep.subr.bf16.mxu0 0
  %1027 = vmatpush1.bf16.msra.mxu0 0
  %1028 = vmatprep.subr.bf16.mxu0 0
  %1029 = vmatpush1.bf16.msra.mxu0 0
  %1030 = vmatprep.subr.bf16.mxu0 0
  %1031 = vmatpush1.bf16.msra.mxu0 %v1015
  %1032 = vmatprep.subr.bf16.mxu0 0
  %1033 = vmatpush1.bf16.msra.mxu0 %v1014
  %1034 = vmatprep.subr.bf16.mxu0 0
  %1035 = vmatpush2.bf16.msra.mxu0 0
  %1036 = vmatprep.subr.bf16.mxu0 0
  %1037 = vmatpush2.bf16.msra.mxu0 0
  %1038 = vmatprep.subr.bf16.mxu0 0
  %1039 = vmatpush2.bf16.msra.mxu0 0
  %1040 = vmatprep.subr.bf16.mxu0 0
  %1041 = vmatpush2.bf16.msra.mxu0 0
  %1042 = vmatprep.subr.bf16.mxu0 0
  %1043 = vmatpush2.bf16.msra.mxu0 0
  %1044 = vmatprep.subr.bf16.mxu0 0
  %1045 = vmatpush2.bf16.msra.mxu0 0
  %1046 = vmatprep.subr.bf16.mxu0 0
  %1047 = vmatpush2.bf16.msra.mxu0 0
  %1048 = vmatprep.subr.bf16.mxu0 0
  %1049 = vmatpush2.bf16.msra.mxu0 0
  %1050 = vmatprep.mubr.bf16.mxu0 0
  %1051 = vmatmul.mubr.bf16.gmra.mxu0 %v751
  %v1052 = vpop.f32.mrf.mxu0
  %v1053 = vadd.f32 %v1004, %v1052
  %v1054 = vpop.f32.mrf.mxu0
  %v1055 = vpop.f32.mrf.mxu0
  %v1056 = vadd.f32 %v1004, %v1055
  %v1057 = vpop.f32.mrf.mxu0
  %1058 = vmatprep.mubr.bf16.mxu0 0
  %1059 = vmatmul.mubr.bf16.gmra.mxu0 %v754
  %v1060 = vpop.f32.mrf.mxu0
  %v1061 = vadd.f32 %v1004, %v1060
  %v1062 = vpop.f32.mrf.mxu0
  %v1063 = vpop.f32.mrf.mxu0
  %v1064 = vadd.f32 %v1004, %v1063
  %v1065 = vpop.f32.mrf.mxu0
  %1066 = vdwg.mxu0
  %v1068 = vsel %vm65, %v133, 0
  %v1071 = vsel %vm65, %v561, 0
  %1073 = vmatprep.subr.bf16.mxu0 0
  %1074 = vmatpush1.bf16.xpose.msra.mxu0 0
  %1075 = vmatprep.subr.bf16.mxu0 0
  %1076 = vmatpush1.bf16.xpose.msra.mxu0 0
  %1077 = vmatprep.subr.bf16.mxu0 0
  %1078 = vmatpush1.bf16.xpose.msra.mxu0 0
  %1079 = vmatprep.subr.bf16.mxu0 0
  %1080 = vmatpush1.bf16.xpose.msra.mxu0 0
  %1081 = vmatprep.subr.bf16.mxu0 0
  %1082 = vmatpush1.bf16.xpose.msra.mxu0 0
  %1083 = vmatprep.subr.bf16.mxu0 0
  %1084 = vmatpush1.bf16.xpose.msra.mxu0 0
  %1085 = vmatprep.subr.bf16.mxu0 0
  %1086 = vmatpush1.bf16.xpose.msra.mxu0 0
  %1087 = vmatprep.subr.bf16.mxu0 0
  %1088 = vmatpush1.bf16.xpose.msra.mxu0 %v1071
  %1089 = vmatprep.subr.bf16.mxu0 0
  %1090 = vmatpush2.bf16.xpose.msra.mxu0 0
  %1091 = vmatprep.subr.bf16.mxu0 0
  %1092 = vmatpush2.bf16.xpose.msra.mxu0 0
  %1093 = vmatprep.subr.bf16.mxu0 0
  %1094 = vmatpush2.bf16.xpose.msra.mxu0 0
  %1095 = vmatprep.subr.bf16.mxu0 0
  %1096 = vmatpush2.bf16.xpose.msra.mxu0 0
  %1097 = vmatprep.subr.bf16.mxu0 0
  %1098 = vmatpush2.bf16.xpose.msra.mxu0 0
  %1099 = vmatprep.subr.bf16.mxu0 0
  %1100 = vmatpush2.bf16.xpose.msra.mxu0 0
  %1101 = vmatprep.subr.bf16.mxu0 0
  %1102 = vmatpush2.bf16.xpose.msra.mxu0 0
  %1103 = vmatprep.subr.bf16.mxu0 0
  %1104 = vmatpush2.bf16.xpose.msra.mxu0 0
  %1105 = vmatprep.mubr.bf16.mxu0 0
  %1106 = vmatmul.mubr.bf16.gmra.mxu0 %v1068
  %v1107 = vpop.f32.mrf.mxu0
  %v1108 = vadd.f32 0.0, %v1107
  %v1109 = vpop.f32.mrf.mxu0
  %v1110 = vpop.f32.mrf.mxu0
  %v1111 = vpop.f32.mrf.mxu0
  %1112 = vdwg.mxu0
  %v1114 = vsel %vm65, %v134, 0
  %v1117 = vsel %vm65, %v562, 0
  %1119 = vmatprep.subr.bf16.mxu0 0
  %1120 = vmatpush1.bf16.xpose.msra.mxu0 0
  %1121 = vmatprep.subr.bf16.mxu0 0
  %1122 = vmatpush1.bf16.xpose.msra.mxu0 0
  %1123 = vmatprep.subr.bf16.mxu0 0
  %1124 = vmatpush1.bf16.xpose.msra.mxu0 0
  %1125 = vmatprep.subr.bf16.mxu0 0
  %1126 = vmatpush1.bf16.xpose.msra.mxu0 0
  %1127 = vmatprep.subr.bf16.mxu0 0
  %1128 = vmatpush1.bf16.xpose.msra.mxu0 0
  %1129 = vmatprep.subr.bf16.mxu0 0
  %1130 = vmatpush1.bf16.xpose.msra.mxu0 0
  %1131 = vmatprep.subr.bf16.mxu0 0
  %1132 = vmatpush1.bf16.xpose.msra.mxu0 0
  %1133 = vmatprep.subr.bf16.mxu0 0
  %1134 = vmatpush1.bf16.xpose.msra.mxu0 %v1117
  %1135 = vmatprep.subr.bf16.mxu0 0
  %1136 = vmatpush2.bf16.xpose.msra.mxu0 0
  %1137 = vmatprep.subr.bf16.mxu0 0
  %1138 = vmatpush2.bf16.xpose.msra.mxu0 0
  %1139 = vmatprep.subr.bf16.mxu0 0
  %1140 = vmatpush2.bf16.xpose.msra.mxu0 0
  %1141 = vmatprep.subr.bf16.mxu0 0
  %1142 = vmatpush2.bf16.xpose.msra.mxu0 0
  %1143 = vmatprep.subr.bf16.mxu0 0
  %1144 = vmatpush2.bf16.xpose.msra.mxu0 0
  %1145 = vmatprep.subr.bf16.mxu0 0
  %1146 = vmatpush2.bf16.xpose.msra.mxu0 0
  %1147 = vmatprep.subr.bf16.mxu0 0
  %1148 = vmatpush2.bf16.xpose.msra.mxu0 0
  %1149 = vmatprep.subr.bf16.mxu0 0
  %1150 = vmatpush2.bf16.xpose.msra.mxu0 0
  %1151 = vmatprep.mubr.bf16.mxu0 0
  %1152 = vmatmul.mubr.bf16.gmra.mxu0 %v1114
  %v1153 = vpop.f32.mrf.mxu0
  %v1154 = vadd.f32 0.0, %v1153
  %v1155 = vpop.f32.mrf.mxu0
  %v1156 = vpop.f32.mrf.mxu0
  %v1157 = vpop.f32.mrf.mxu0
  %1158 = vdwg.mxu0
  %v1160 = vsel %vm65, %v135, 0
  %v1163 = vsel %vm65, %v563, 0
  %1165 = vmatprep.subr.bf16.mxu0 0
  %1166 = vmatpush1.bf16.xpose.msra.mxu0 0
  %1167 = vmatprep.subr.bf16.mxu0 0
  %1168 = vmatpush1.bf16.xpose.msra.mxu0 0
  %1169 = vmatprep.subr.bf16.mxu0 0
  %1170 = vmatpush1.bf16.xpose.msra.mxu0 0
  %1171 = vmatprep.subr.bf16.mxu0 0
  %1172 = vmatpush1.bf16.xpose.msra.mxu0 0
  %1173 = vmatprep.subr.bf16.mxu0 0
  %1174 = vmatpush1.bf16.xpose.msra.mxu0 0
  %1175 = vmatprep.subr.bf16.mxu0 0
  %1176 = vmatpush1.bf16.xpose.msra.mxu0 0
  %1177 = vmatprep.subr.bf16.mxu0 0
  %1178 = vmatpush1.bf16.xpose.msra.mxu0 0
  %1179 = vmatprep.subr.bf16.mxu0 0
  %1180 = vmatpush1.bf16.xpose.msra.mxu0 %v1163
  %1181 = vmatprep.subr.bf16.mxu0 0
  %1182 = vmatpush2.bf16.xpose.msra.mxu0 0
  %1183 = vmatprep.subr.bf16.mxu0 0
  %1184 = vmatpush2.bf16.xpose.msra.mxu0 0
  %1185 = vmatprep.subr.bf16.mxu0 0
  %1186 = vmatpush2.bf16.xpose.msra.mxu0 0
  %1187 = vmatprep.subr.bf16.mxu0 0
  %1188 = vmatpush2.bf16.xpose.msra.mxu0 0
  %1189 = vmatprep.subr.bf16.mxu0 0
  %1190 = vmatpush2.bf16.xpose.msra.mxu0 0
  %1191 = vmatprep.subr.bf16.mxu0 0
  %1192 = vmatpush2.bf16.xpose.msra.mxu0 0
  %1193 = vmatprep.subr.bf16.mxu0 0
  %1194 = vmatpush2.bf16.xpose.msra.mxu0 0
  %1195 = vmatprep.subr.bf16.mxu0 0
  %1196 = vmatpush2.bf16.xpose.msra.mxu0 0
  %1197 = vmatprep.mubr.bf16.mxu0 0
  %1198 = vmatmul.mubr.bf16.gmra.mxu0 %v1160
  %v1199 = vpop.f32.mrf.mxu0
  %v1200 = vadd.f32 0.0, %v1199
  %v1201 = vpop.f32.mrf.mxu0
  %v1202 = vpop.f32.mrf.mxu0
  %v1203 = vpop.f32.mrf.mxu0
  %1204 = vdwg.mxu0
  %v1206 = vsel %vm65, %v136, 0
  %v1209 = vsel %vm65, %v564, 0
  %1211 = vmatprep.subr.bf16.mxu0 0
  %1212 = vmatpush1.bf16.xpose.msra.mxu0 0
  %1213 = vmatprep.subr.bf16.mxu0 0
  %1214 = vmatpush1.bf16.xpose.msra.mxu0 0
  %1215 = vmatprep.subr.bf16.mxu0 0
  %1216 = vmatpush1.bf16.xpose.msra.mxu0 0
  %1217 = vmatprep.subr.bf16.mxu0 0
  %1218 = vmatpush1.bf16.xpose.msra.mxu0 0
  %1219 = vmatprep.subr.bf16.mxu0 0
  %1220 = vmatpush1.bf16.xpose.msra.mxu0 0
  %1221 = vmatprep.subr.bf16.mxu0 0
  %1222 = vmatpush1.bf16.xpose.msra.mxu0 0
  %1223 = vmatprep.subr.bf16.mxu0 0
  %1224 = vmatpush1.bf16.xpose.msra.mxu0 0
  %1225 = vmatprep.subr.bf16.mxu0 0
  %1226 = vmatpush1.bf16.xpose.msra.mxu0 %v1209
  %1227 = vmatprep.subr.bf16.mxu0 0
  %1228 = vmatpush2.bf16.xpose.msra.mxu0 0
  %1229 = vmatprep.subr.bf16.mxu0 0
  %1230 = vmatpush2.bf16.xpose.msra.mxu0 0
  %1231 = vmatprep.subr.bf16.mxu0 0
  %1232 = vmatpush2.bf16.xpose.msra.mxu0 0
  %1233 = vmatprep.subr.bf16.mxu0 0
  %1234 = vmatpush2.bf16.xpose.msra.mxu0 0
  %1235 = vmatprep.subr.bf16.mxu0 0
  %1236 = vmatpush2.bf16.xpose.msra.mxu0 0
  %1237 = vmatprep.subr.bf16.mxu0 0
  %1238 = vmatpush2.bf16.xpose.msra.mxu0 0
  %1239 = vmatprep.subr.bf16.mxu0 0
  %1240 = vmatpush2.bf16.xpose.msra.mxu0 0
  %1241 = vmatprep.subr.bf16.mxu0 0
  %1242 = vmatpush2.bf16.xpose.msra.mxu0 0
  %1243 = vmatprep.mubr.bf16.mxu0 0
  %1244 = vmatmul.mubr.bf16.gmra.mxu0 %v1206
  %v1245 = vpop.f32.mrf.mxu0
  %v1246 = vadd.f32 0.0, %v1245
  %v1247 = vpop.f32.mrf.mxu0
  %v1248 = vpop.f32.mrf.mxu0
  %v1249 = vpop.f32.mrf.mxu0
  %1250 = vdwg.mxu0
  %vm1251 = vcmask 64512
  %v1252 = vsel %vm1251, %v1108, -inf
  %1253 = vmax.xlane.f32.xlu0 %v1252
  %v1254 = vpop.xlane.xlu0 %1253
  %v1255 = vsel %vm1251, %v1154, -inf
  %1256 = vmax.xlane.f32.xlu0 %v1255
  %v1257 = vpop.xlane.xlu0 %1256
  %v1258 = vsel %vm1251, %v1200, -inf
  %1259 = vmax.xlane.f32.xlu0 %v1258
  %v1260 = vpop.xlane.xlu0 %1259
  %v1261 = vsel %vm1251, %v1246, -inf
  %1262 = vmax.xlane.f32.xlu0 %v1261
  %v1263 = vpop.xlane.xlu0 %1262
  %v1264 = vsub.f32 %v1108, %v1254
  %v1265 = vsub.f32 %v1154, %v1257
  %v1266 = vsub.f32 %v1200, %v1260
  %v1267 = vsub.f32 %v1246, %v1263
  %v1268 = vmul.f32 %v1264, 1.442695
  %v1269 = vpow.pop %v1268
  %v1270 = vmul.f32 %v1265, 1.442695
  %v1271 = vpow.pop %v1270
  %v1272 = vmul.f32 %v1266, 1.442695
  %v1273 = vpow.pop %v1272
  %v1274 = vmul.f32 %v1267, 1.442695
  %v1275 = vpow.pop %v1274
  %v1276 = vsel %vm1251, %v1269, 0.0
  %1277 = vadd.xlane.f32.xlu0 %v1276
  %v1278 = vpop.xlane.xlu0 %1277
  %v1279 = vsel %vm1251, %v1271, 0.0
  %1280 = vadd.xlane.f32.xlu0 %v1279
  %v1281 = vpop.xlane.xlu0 %1280
  %v1282 = vsel %vm1251, %v1273, 0.0
  %1283 = vadd.xlane.f32.xlu0 %v1282
  %v1284 = vpop.xlane.xlu0 %1283
  %v1285 = vsel %vm1251, %v1275, 0.0
  %1286 = vadd.xlane.f32.xlu0 %v1285
  %v1287 = vpop.xlane.xlu0 %1286
  %v1288 = vrcp.pop %v1278
  %v1289 = vrcp.pop %v1281
  %v1290 = vrcp.pop %v1284
  %v1291 = vrcp.pop %v1287
  %v1292 = vmul.f32 %v1269, %v1288
  %v1293 = vmul.f32 %v1271, %v1289
  %v1294 = vmul.f32 %v1273, %v1290
  %v1295 = vmul.f32 %v1275, %v1291
  %v1296 = vpack.c.bf16 %v1292, %v1292
  %v1297 = vpack.c.bf16 %v1293, %v1293
  %v1298 = vpack.c.bf16 %v1294, %v1294
  %v1299 = vpack.c.bf16 %v1295, %v1295
  %v1301 = vsel %vm1251, %v1296, 0
  %vm1303 = vcmask 1043456
  %v1305 = vsel %vm1303, %v647, 0
  %1307 = vmatprep.subr.bf16.mxu0 0
  %1308 = vmatpush1.bf16.msra.mxu0 0
  %1309 = vmatprep.subr.bf16.mxu0 0
  %1310 = vmatpush1.bf16.msra.mxu0 0
  %1311 = vmatprep.subr.bf16.mxu0 0
  %1312 = vmatpush1.bf16.msra.mxu0 0
  %1313 = vmatprep.subr.bf16.mxu0 0
  %1314 = vmatpush1.bf16.msra.mxu0 0
  %1315 = vmatprep.subr.bf16.mxu0 0
  %1316 = vmatpush1.bf16.msra.mxu0 0
  %1317 = vmatprep.subr.bf16.mxu0 0
  %1318 = vmatpush1.bf16.msra.mxu0 0
  %1319 = vmatprep.subr.bf16.mxu0 0
  %1320 = vmatpush1.bf16.msra.mxu0 0
  %1321 = vmatprep.subr.bf16.mxu0 0
  %1322 = vmatpush1.bf16.msra.mxu0 %v1305
  %1323 = vmatprep.subr.bf16.mxu0 0
  %1324 = vmatpush2.bf16.msra.mxu0 0
  %1325 = vmatprep.subr.bf16.mxu0 0
  %1326 = vmatpush2.bf16.msra.mxu0 0
  %1327 = vmatprep.subr.bf16.mxu0 0
  %1328 = vmatpush2.bf16.msra.mxu0 0
  %1329 = vmatprep.subr.bf16.mxu0 0
  %1330 = vmatpush2.bf16.msra.mxu0 0
  %1331 = vmatprep.subr.bf16.mxu0 0
  %1332 = vmatpush2.bf16.msra.mxu0 0
  %1333 = vmatprep.subr.bf16.mxu0 0
  %1334 = vmatpush2.bf16.msra.mxu0 0
  %1335 = vmatprep.subr.bf16.mxu0 0
  %1336 = vmatpush2.bf16.msra.mxu0 0
  %1337 = vmatprep.subr.bf16.mxu0 0
  %1338 = vmatpush2.bf16.msra.mxu0 0
  %1339 = vmatprep.mubr.bf16.mxu0 0
  %1340 = vmatmul.mubr.bf16.gmra.mxu0 %v1301
  %v1341 = vpop.f32.mrf.mxu0
  %v1342 = vadd.f32 0.0, %v1341
  %v1343 = vpop.f32.mrf.mxu0
  %v1344 = vpop.f32.mrf.mxu0
  %v1345 = vpop.f32.mrf.mxu0
  %1346 = vdwg.mxu0
  %v1348 = vsel %vm1251, %v1297, 0
  %v1351 = vsel %vm1303, %v648, 0
  %1353 = vmatprep.subr.bf16.mxu0 0
  %1354 = vmatpush1.bf16.msra.mxu0 0
  %1355 = vmatprep.subr.bf16.mxu0 0
  %1356 = vmatpush1.bf16.msra.mxu0 0
  %1357 = vmatprep.subr.bf16.mxu0 0
  %1358 = vmatpush1.bf16.msra.mxu0 0
  %1359 = vmatprep.subr.bf16.mxu0 0
  %1360 = vmatpush1.bf16.msra.mxu0 0
  %1361 = vmatprep.subr.bf16.mxu0 0
  %1362 = vmatpush1.bf16.msra.mxu0 0
  %1363 = vmatprep.subr.bf16.mxu0 0
  %1364 = vmatpush1.bf16.msra.mxu0 0
  %1365 = vmatprep.subr.bf16.mxu0 0
  %1366 = vmatpush1.bf16.msra.mxu0 0
  %1367 = vmatprep.subr.bf16.mxu0 0
  %1368 = vmatpush1.bf16.msra.mxu0 %v1351
  %1369 = vmatprep.subr.bf16.mxu0 0
  %1370 = vmatpush2.bf16.msra.mxu0 0
  %1371 = vmatprep.subr.bf16.mxu0 0
  %1372 = vmatpush2.bf16.msra.mxu0 0
  %1373 = vmatprep.subr.bf16.mxu0 0
  %1374 = vmatpush2.bf16.msra.mxu0 0
  %1375 = vmatprep.subr.bf16.mxu0 0
  %1376 = vmatpush2.bf16.msra.mxu0 0
  %1377 = vmatprep.subr.bf16.mxu0 0
  %1378 = vmatpush2.bf16.msra.mxu0 0
  %1379 = vmatprep.subr.bf16.mxu0 0
  %1380 = vmatpush2.bf16.msra.mxu0 0
  %1381 = vmatprep.subr.bf16.mxu0 0
  %1382 = vmatpush2.bf16.msra.mxu0 0
  %1383 = vmatprep.subr.bf16.mxu0 0
  %1384 = vmatpush2.bf16.msra.mxu0 0
  %1385 = vmatprep.mubr.bf16.mxu0 0
  %1386 = vmatmul.mubr.bf16.gmra.mxu0 %v1348
  %v1387 = vpop.f32.mrf.mxu0
  %v1388 = vadd.f32 0.0, %v1387
  %v1389 = vpop.f32.mrf.mxu0
  %v1390 = vpop.f32.mrf.mxu0
  %v1391 = vpop.f32.mrf.mxu0
  %1392 = vdwg.mxu0
  %v1394 = vsel %vm1251, %v1298, 0
  %v1397 = vsel %vm1303, %v649, 0
  %1399 = vmatprep.subr.bf16.mxu0 0
  %1400 = vmatpush1.bf16.msra.mxu0 0
  %1401 = vmatprep.subr.bf16.mxu0 0
  %1402 = vmatpush1.bf16.msra.mxu0 0
  %1403 = vmatprep.subr.bf16.mxu0 0
  %1404 = vmatpush1.bf16.msra.mxu0 0
  %1405 = vmatprep.subr.bf16.mxu0 0
  %1406 = vmatpush1.bf16.msra.mxu0 0
  %1407 = vmatprep.subr.bf16.mxu0 0
  %1408 = vmatpush1.bf16.msra.mxu0 0
  %1409 = vmatprep.subr.bf16.mxu0 0
  %1410 = vmatpush1.bf16.msra.mxu0 0
  %1411 = vmatprep.subr.bf16.mxu0 0
  %1412 = vmatpush1.bf16.msra.mxu0 0
  %1413 = vmatprep.subr.bf16.mxu0 0
  %1414 = vmatpush1.bf16.msra.mxu0 %v1397
  %1415 = vmatprep.subr.bf16.mxu0 0
  %1416 = vmatpush2.bf16.msra.mxu0 0
  %1417 = vmatprep.subr.bf16.mxu0 0
  %1418 = vmatpush2.bf16.msra.mxu0 0
  %1419 = vmatprep.subr.bf16.mxu0 0
  %1420 = vmatpush2.bf16.msra.mxu0 0
  %1421 = vmatprep.subr.bf16.mxu0 0
  %1422 = vmatpush2.bf16.msra.mxu0 0
  %1423 = vmatprep.subr.bf16.mxu0 0
  %1424 = vmatpush2.bf16.msra.mxu0 0
  %1425 = vmatprep.subr.bf16.mxu0 0
  %1426 = vmatpush2.bf16.msra.mxu0 0
  %1427 = vmatprep.subr.bf16.mxu0 0
  %1428 = vmatpush2.bf16.msra.mxu0 0
  %1429 = vmatprep.subr.bf16.mxu0 0
  %1430 = vmatpush2.bf16.msra.mxu0 0
  %1431 = vmatprep.mubr.bf16.mxu0 0
  %1432 = vmatmul.mubr.bf16.gmra.mxu0 %v1394
  %v1433 = vpop.f32.mrf.mxu0
  %v1434 = vadd.f32 0.0, %v1433
  %v1435 = vpop.f32.mrf.mxu0
  %v1436 = vpop.f32.mrf.mxu0
  %v1437 = vpop.f32.mrf.mxu0
  %1438 = vdwg.mxu0
  %v1440 = vsel %vm1251, %v1299, 0
  %v1443 = vsel %vm1303, %v650, 0
  %1445 = vmatprep.subr.bf16.mxu0 0
  %1446 = vmatpush1.bf16.msra.mxu0 0
  %1447 = vmatprep.subr.bf16.mxu0 0
  %1448 = vmatpush1.bf16.msra.mxu0 0
  %1449 = vmatprep.subr.bf16.mxu0 0
  %1450 = vmatpush1.bf16.msra.mxu0 0
  %1451 = vmatprep.subr.bf16.mxu0 0
  %1452 = vmatpush1.bf16.msra.mxu0 0
  %1453 = vmatprep.subr.bf16.mxu0 0
  %1454 = vmatpush1.bf16.msra.mxu0 0
  %1455 = vmatprep.subr.bf16.mxu0 0
  %1456 = vmatpush1.bf16.msra.mxu0 0
  %1457 = vmatprep.subr.bf16.mxu0 0
  %1458 = vmatpush1.bf16.msra.mxu0 0
  %1459 = vmatprep.subr.bf16.mxu0 0
  %1460 = vmatpush1.bf16.msra.mxu0 %v1443
  %1461 = vmatprep.subr.bf16.mxu0 0
  %1462 = vmatpush2.bf16.msra.mxu0 0
  %1463 = vmatprep.subr.bf16.mxu0 0
  %1464 = vmatpush2.bf16.msra.mxu0 0
  %1465 = vmatprep.subr.bf16.mxu0 0
  %1466 = vmatpush2.bf16.msra.mxu0 0
  %1467 = vmatprep.subr.bf16.mxu0 0
  %1468 = vmatpush2.bf16.msra.mxu0 0
  %1469 = vmatprep.subr.bf16.mxu0 0
  %1470 = vmatpush2.bf16.msra.mxu0 0
  %1471 = vmatprep.subr.bf16.mxu0 0
  %1472 = vmatpush2.bf16.msra.mxu0 0
  %1473 = vmatprep.subr.bf16.mxu0 0
  %1474 = vmatpush2.bf16.msra.mxu0 0
  %1475 = vmatprep.subr.bf16.mxu0 0
  %1476 = vmatpush2.bf16.msra.mxu0 0
  %1477 = vmatprep.mubr.bf16.mxu0 0
  %1478 = vmatmul.mubr.bf16.gmra.mxu0 %v1440
  %v1479 = vpop.f32.mrf.mxu0
  %v1480 = vadd.f32 0.0, %v1479
  %v1481 = vpop.f32.mrf.mxu0
  %v1482 = vpop.f32.mrf.mxu0
  %v1483 = vpop.f32.mrf.mxu0
  %1484 = vdwg.mxu0
  %v1485 = vpack.c.bf16 %v1388, %v1342
  %v1486 = vpack.c.bf16 %v1480, %v1434
  %v1487 = vld [vmem:[%s5] sm:$0xf]
  %v1488 = vld [vmem:[%s5 + $0x4] sm:$0xf]
  %v1489 = vld [vmem:[%s5 + $0x8] sm:$0xf]
  %v1490 = vld [vmem:[%s5 + $0xc] sm:$0xf]
  %v1495 = vunpack.c.l.b16 %v1487
  %v1496 = vunpack.c.l.b16 %v1488
  %v1497 = vunpack.c.l.b16 %v1489
  %v1498 = vunpack.c.l.b16 %v1490
  %v1499 = vpack.c.b16 %v1496, %v1495
  %v1500 = vpack.c.b16 %v1498, %v1497
  %v1504 = vsel %vm65, %v1485, 0
  %v1507 = vsel %vm65, %v1486, 0
  %1509 = vmatprep.subr.bf16.mxu0 0
  %1510 = vmatpush1.bf16.msra.mxu0 0
  %1511 = vmatprep.subr.bf16.mxu0 0
  %1512 = vmatpush1.bf16.msra.mxu0 0
  %1513 = vmatprep.subr.bf16.mxu0 0
  %1514 = vmatpush1.bf16.msra.mxu0 0
  %1515 = vmatprep.subr.bf16.mxu0 0
  %1516 = vmatpush1.bf16.msra.mxu0 0
  %1517 = vmatprep.subr.bf16.mxu0 0
  %1518 = vmatpush1.bf16.msra.mxu0 0
  %1519 = vmatprep.subr.bf16.mxu0 0
  %1520 = vmatpush1.bf16.msra.mxu0 0
  %1521 = vmatprep.subr.bf16.mxu0 0
  %1522 = vmatpush1.bf16.msra.mxu0 %v1500
  %1523 = vmatprep.subr.bf16.mxu0 0
  %1524 = vmatpush1.bf16.msra.mxu0 %v1499
  %1525 = vmatprep.subr.bf16.mxu0 0
  %1526 = vmatpush2.bf16.msra.mxu0 0
  %1527 = vmatprep.subr.bf16.mxu0 0
  %1528 = vmatpush2.bf16.msra.mxu0 0
  %1529 = vmatprep.subr.bf16.mxu0 0
  %1530 = vmatpush2.bf16.msra.mxu0 0
  %1531 = vmatprep.subr.bf16.mxu0 0
  %1532 = vmatpush2.bf16.msra.mxu0 0
  %1533 = vmatprep.subr.bf16.mxu0 0
  %1534 = vmatpush2.bf16.msra.mxu0 0
  %1535 = vmatprep.subr.bf16.mxu0 0
  %1536 = vmatpush2.bf16.msra.mxu0 0
  %1537 = vmatprep.subr.bf16.mxu0 0
  %1538 = vmatpush2.bf16.msra.mxu0 0
  %1539 = vmatprep.subr.bf16.mxu0 0
  %1540 = vmatpush2.bf16.msra.mxu0 0
  %1541 = vmatprep.mubr.bf16.mxu0 0
  %1542 = vmatmul.mubr.bf16.gmra.mxu0 %v1504
  %v1543 = vpop.f32.mrf.mxu0
  %v1544 = vadd.f32 0.0, %v1543
  %v1545 = vpop.f32.mrf.mxu0
  %v1546 = vpop.f32.mrf.mxu0
  %v1547 = vadd.f32 0.0, %v1546
  %v1548 = vpop.f32.mrf.mxu0
  %1549 = vmatprep.mubr.bf16.mxu0 0
  %1550 = vmatmul.mubr.bf16.gmra.mxu0 %v1507
  %v1551 = vpop.f32.mrf.mxu0
  %v1552 = vadd.f32 0.0, %v1551
  %v1553 = vpop.f32.mrf.mxu0
  %v1554 = vpop.f32.mrf.mxu0
  %v1555 = vadd.f32 0.0, %v1554
  %v1556 = vpop.f32.mrf.mxu0
  %1557 = vdwg.mxu0
  %v1558 = vadd.f32 %v369, %v1544
  %v1559 = vadd.f32 %v372, %v1547
  %v1560 = vadd.f32 %v377, %v1552
  %v1561 = vadd.f32 %v380, %v1555
  %1562 = vst.msk [vmem:[%s6] sm:$0xff] %vm65, %v1558
  %1563 = vst.msk [vmem:[%s6 + $0x18] sm:$0xff] %vm65, %v1559
  %1564 = vst.msk [vmem:[%s6 + $0x30] sm:$0xff] %vm65, %v1560
  %1565 = vst.msk [vmem:[%s6 + $0x48] sm:$0xff] %vm65, %v1561
  %v1567 = vsel %vm65, %v475, 0
  %v1570 = vsel %vm65, %v903, 0
  %1572 = vmatprep.subr.bf16.mxu0 0
  %1573 = vmatpush1.bf16.xpose.msra.mxu0 0
  %1574 = vmatprep.subr.bf16.mxu0 0
  %1575 = vmatpush1.bf16.xpose.msra.mxu0 0
  %1576 = vmatprep.subr.bf16.mxu0 0
  %1577 = vmatpush1.bf16.xpose.msra.mxu0 0
  %1578 = vmatprep.subr.bf16.mxu0 0
  %1579 = vmatpush1.bf16.xpose.msra.mxu0 0
  %1580 = vmatprep.subr.bf16.mxu0 0
  %1581 = vmatpush1.bf16.xpose.msra.mxu0 0
  %1582 = vmatprep.subr.bf16.mxu0 0
  %1583 = vmatpush1.bf16.xpose.msra.mxu0 0
  %1584 = vmatprep.subr.bf16.mxu0 0
  %1585 = vmatpush1.bf16.xpose.msra.mxu0 0
  %1586 = vmatprep.subr.bf16.mxu0 0
  %1587 = vmatpush1.bf16.xpose.msra.mxu0 %v1570
  %1588 = vmatprep.subr.bf16.mxu0 0
  %1589 = vmatpush2.bf16.xpose.msra.mxu0 0
  %1590 = vmatprep.subr.bf16.mxu0 0
  %1591 = vmatpush2.bf16.xpose.msra.mxu0 0
  %1592 = vmatprep.subr.bf16.mxu0 0
  %1593 = vmatpush2.bf16.xpose.msra.mxu0 0
  %1594 = vmatprep.subr.bf16.mxu0 0
  %1595 = vmatpush2.bf16.xpose.msra.mxu0 0
  %1596 = vmatprep.subr.bf16.mxu0 0
  %1597 = vmatpush2.bf16.xpose.msra.mxu0 0
  %1598 = vmatprep.subr.bf16.mxu0 0
  %1599 = vmatpush2.bf16.xpose.msra.mxu0 0
  %1600 = vmatprep.subr.bf16.mxu0 0
  %1601 = vmatpush2.bf16.xpose.msra.mxu0 0
  %1602 = vmatprep.subr.bf16.mxu0 0
  %1603 = vmatpush2.bf16.xpose.msra.mxu0 0
  %1604 = vmatprep.mubr.bf16.mxu0 0
  %1605 = vmatmul.mubr.bf16.gmra.mxu0 %v1567
  %v1606 = vpop.f32.mrf.mxu0
  %v1607 = vadd.f32 0.0, %v1606
  %v1608 = vpop.f32.mrf.mxu0
  %v1609 = vpop.f32.mrf.mxu0
  %v1610 = vpop.f32.mrf.mxu0
  %1611 = vdwg.mxu0
  %v1613 = vsel %vm65, %v476, 0
  %v1616 = vsel %vm65, %v904, 0
  %1618 = vmatprep.subr.bf16.mxu0 0
  %1619 = vmatpush1.bf16.xpose.msra.mxu0 0
  %1620 = vmatprep.subr.bf16.mxu0 0
  %1621 = vmatpush1.bf16.xpose.msra.mxu0 0
  %1622 = vmatprep.subr.bf16.mxu0 0
  %1623 = vmatpush1.bf16.xpose.msra.mxu0 0
  %1624 = vmatprep.subr.bf16.mxu0 0
  %1625 = vmatpush1.bf16.xpose.msra.mxu0 0
  %1626 = vmatprep.subr.bf16.mxu0 0
  %1627 = vmatpush1.bf16.xpose.msra.mxu0 0
  %1628 = vmatprep.subr.bf16.mxu0 0
  %1629 = vmatpush1.bf16.xpose.msra.mxu0 0
  %1630 = vmatprep.subr.bf16.mxu0 0
  %1631 = vmatpush1.bf16.xpose.msra.mxu0 0
  %1632 = vmatprep.subr.bf16.mxu0 0
  %1633 = vmatpush1.bf16.xpose.msra.mxu0 %v1616
  %1634 = vmatprep.subr.bf16.mxu0 0
  %1635 = vmatpush2.bf16.xpose.msra.mxu0 0
  %1636 = vmatprep.subr.bf16.mxu0 0
  %1637 = vmatpush2.bf16.xpose.msra.mxu0 0
  %1638 = vmatprep.subr.bf16.mxu0 0
  %1639 = vmatpush2.bf16.xpose.msra.mxu0 0
  %1640 = vmatprep.subr.bf16.mxu0 0
  %1641 = vmatpush2.bf16.xpose.msra.mxu0 0
  %1642 = vmatprep.subr.bf16.mxu0 0
  %1643 = vmatpush2.bf16.xpose.msra.mxu0 0
  %1644 = vmatprep.subr.bf16.mxu0 0
  %1645 = vmatpush2.bf16.xpose.msra.mxu0 0
  %1646 = vmatprep.subr.bf16.mxu0 0
  %1647 = vmatpush2.bf16.xpose.msra.mxu0 0
  %1648 = vmatprep.subr.bf16.mxu0 0
  %1649 = vmatpush2.bf16.xpose.msra.mxu0 0
  %1650 = vmatprep.mubr.bf16.mxu0 0
  %1651 = vmatmul.mubr.bf16.gmra.mxu0 %v1613
  %v1652 = vpop.f32.mrf.mxu0
  %v1653 = vadd.f32 0.0, %v1652
  %v1654 = vpop.f32.mrf.mxu0
  %v1655 = vpop.f32.mrf.mxu0
  %v1656 = vpop.f32.mrf.mxu0
  %1657 = vdwg.mxu0
  %v1659 = vsel %vm65, %v477, 0
  %v1662 = vsel %vm65, %v905, 0
  %1664 = vmatprep.subr.bf16.mxu0 0
  %1665 = vmatpush1.bf16.xpose.msra.mxu0 0
  %1666 = vmatprep.subr.bf16.mxu0 0
  %1667 = vmatpush1.bf16.xpose.msra.mxu0 0
  %1668 = vmatprep.subr.bf16.mxu0 0
  %1669 = vmatpush1.bf16.xpose.msra.mxu0 0
  %1670 = vmatprep.subr.bf16.mxu0 0
  %1671 = vmatpush1.bf16.xpose.msra.mxu0 0
  %1672 = vmatprep.subr.bf16.mxu0 0
  %1673 = vmatpush1.bf16.xpose.msra.mxu0 0
  %1674 = vmatprep.subr.bf16.mxu0 0
  %1675 = vmatpush1.bf16.xpose.msra.mxu0 0
  %1676 = vmatprep.subr.bf16.mxu0 0
  %1677 = vmatpush1.bf16.xpose.msra.mxu0 0
  %1678 = vmatprep.subr.bf16.mxu0 0
  %1679 = vmatpush1.bf16.xpose.msra.mxu0 %v1662
  %1680 = vmatprep.subr.bf16.mxu0 0
  %1681 = vmatpush2.bf16.xpose.msra.mxu0 0
  %1682 = vmatprep.subr.bf16.mxu0 0
  %1683 = vmatpush2.bf16.xpose.msra.mxu0 0
  %1684 = vmatprep.subr.bf16.mxu0 0
  %1685 = vmatpush2.bf16.xpose.msra.mxu0 0
  %1686 = vmatprep.subr.bf16.mxu0 0
  %1687 = vmatpush2.bf16.xpose.msra.mxu0 0
  %1688 = vmatprep.subr.bf16.mxu0 0
  %1689 = vmatpush2.bf16.xpose.msra.mxu0 0
  %1690 = vmatprep.subr.bf16.mxu0 0
  %1691 = vmatpush2.bf16.xpose.msra.mxu0 0
  %1692 = vmatprep.subr.bf16.mxu0 0
  %1693 = vmatpush2.bf16.xpose.msra.mxu0 0
  %1694 = vmatprep.subr.bf16.mxu0 0
  %1695 = vmatpush2.bf16.xpose.msra.mxu0 0
  %1696 = vmatprep.mubr.bf16.mxu0 0
  %1697 = vmatmul.mubr.bf16.gmra.mxu0 %v1659
  %v1698 = vpop.f32.mrf.mxu0
  %v1699 = vadd.f32 0.0, %v1698
  %v1700 = vpop.f32.mrf.mxu0
  %v1701 = vpop.f32.mrf.mxu0
  %v1702 = vpop.f32.mrf.mxu0
  %1703 = vdwg.mxu0
  %v1705 = vsel %vm65, %v478, 0
  %v1708 = vsel %vm65, %v906, 0
  %1710 = vmatprep.subr.bf16.mxu0 0
  %1711 = vmatpush1.bf16.xpose.msra.mxu0 0
  %1712 = vmatprep.subr.bf16.mxu0 0
  %1713 = vmatpush1.bf16.xpose.msra.mxu0 0
  %1714 = vmatprep.subr.bf16.mxu0 0
  %1715 = vmatpush1.bf16.xpose.msra.mxu0 0
  %1716 = vmatprep.subr.bf16.mxu0 0
  %1717 = vmatpush1.bf16.xpose.msra.mxu0 0
  %1718 = vmatprep.subr.bf16.mxu0 0
  %1719 = vmatpush1.bf16.xpose.msra.mxu0 0
  %1720 = vmatprep.subr.bf16.mxu0 0
  %1721 = vmatpush1.bf16.xpose.msra.mxu0 0
  %1722 = vmatprep.subr.bf16.mxu0 0
  %1723 = vmatpush1.bf16.xpose.msra.mxu0 0
  %1724 = vmatprep.subr.bf16.mxu0 0
  %1725 = vmatpush1.bf16.xpose.msra.mxu0 %v1708
  %1726 = vmatprep.subr.bf16.mxu0 0
  %1727 = vmatpush2.bf16.xpose.msra.mxu0 0
  %1728 = vmatprep.subr.bf16.mxu0 0
  %1729 = vmatpush2.bf16.xpose.msra.mxu0 0
  %1730 = vmatprep.subr.bf16.mxu0 0
  %1731 = vmatpush2.bf16.xpose.msra.mxu0 0
  %1732 = vmatprep.subr.bf16.mxu0 0
  %1733 = vmatpush2.bf16.xpose.msra.mxu0 0
  %1734 = vmatprep.subr.bf16.mxu0 0
  %1735 = vmatpush2.bf16.xpose.msra.mxu0 0
  %1736 = vmatprep.subr.bf16.mxu0 0
  %1737 = vmatpush2.bf16.xpose.msra.mxu0 0
  %1738 = vmatprep.subr.bf16.mxu0 0
  %1739 = vmatpush2.bf16.xpose.msra.mxu0 0
  %1740 = vmatprep.subr.bf16.mxu0 0
  %1741 = vmatpush2.bf16.xpose.msra.mxu0 0
  %1742 = vmatprep.mubr.bf16.mxu0 0
  %1743 = vmatmul.mubr.bf16.gmra.mxu0 %v1705
  %v1744 = vpop.f32.mrf.mxu0
  %v1745 = vadd.f32 0.0, %v1744
  %v1746 = vpop.f32.mrf.mxu0
  %v1747 = vpop.f32.mrf.mxu0
  %v1748 = vpop.f32.mrf.mxu0
  %1749 = vdwg.mxu0
  %v1750 = vsel %vm1251, %v1607, -inf
  %1751 = vmax.xlane.f32.xlu0 %v1750
  %v1752 = vpop.xlane.xlu0 %1751
  %v1753 = vsel %vm1251, %v1653, -inf
  %1754 = vmax.xlane.f32.xlu0 %v1753
  %v1755 = vpop.xlane.xlu0 %1754
  %v1756 = vsel %vm1251, %v1699, -inf
  %1757 = vmax.xlane.f32.xlu0 %v1756
  %v1758 = vpop.xlane.xlu0 %1757
  %v1759 = vsel %vm1251, %v1745, -inf
  %1760 = vmax.xlane.f32.xlu0 %v1759
  %v1761 = vpop.xlane.xlu0 %1760
  %v1762 = vsub.f32 %v1607, %v1752
  %v1763 = vsub.f32 %v1653, %v1755
  %v1764 = vsub.f32 %v1699, %v1758
  %v1765 = vsub.f32 %v1745, %v1761
  %v1766 = vmul.f32 %v1762, 1.442695
  %v1767 = vpow.pop %v1766
  %v1768 = vmul.f32 %v1763, 1.442695
  %v1769 = vpow.pop %v1768
  %v1770 = vmul.f32 %v1764, 1.442695
  %v1771 = vpow.pop %v1770
  %v1772 = vmul.f32 %v1765, 1.442695
  %v1773 = vpow.pop %v1772
  %v1774 = vsel %vm1251, %v1767, 0.0
  %1775 = vadd.xlane.f32.xlu0 %v1774
  %v1776 = vpop.xlane.xlu0 %1775
  %v1777 = vsel %vm1251, %v1769, 0.0
  %1778 = vadd.xlane.f32.xlu0 %v1777
  %v1779 = vpop.xlane.xlu0 %1778
  %v1780 = vsel %vm1251, %v1771, 0.0
  %1781 = vadd.xlane.f32.xlu0 %v1780
  %v1782 = vpop.xlane.xlu0 %1781
  %v1783 = vsel %vm1251, %v1773, 0.0
  %1784 = vadd.xlane.f32.xlu0 %v1783
  %v1785 = vpop.xlane.xlu0 %1784
  %v1786 = vrcp.pop %v1776
  %v1787 = vrcp.pop %v1779
  %v1788 = vrcp.pop %v1782
  %v1789 = vrcp.pop %v1785
  %v1790 = vmul.f32 %v1767, %v1786
  %v1791 = vmul.f32 %v1769, %v1787
  %v1792 = vmul.f32 %v1771, %v1788
  %v1793 = vmul.f32 %v1773, %v1789
  %v1794 = vpack.c.bf16 %v1790, %v1790
  %v1795 = vpack.c.bf16 %v1791, %v1791
  %v1796 = vpack.c.bf16 %v1792, %v1792
  %v1797 = vpack.c.bf16 %v1793, %v1793
  %v1799 = vsel %vm1251, %v1794, 0
  %v1802 = vsel %vm1303, %v989, 0
  %1804 = vmatprep.subr.bf16.mxu0 0
  %1805 = vmatpush1.bf16.msra.mxu0 0
  %1806 = vmatprep.subr.bf16.mxu0 0
  %1807 = vmatpush1.bf16.msra.mxu0 0
  %1808 = vmatprep.subr.bf16.mxu0 0
  %1809 = vmatpush1.bf16.msra.mxu0 0
  %1810 = vmatprep.subr.bf16.mxu0 0
  %1811 = vmatpush1.bf16.msra.mxu0 0
  %1812 = vmatprep.subr.bf16.mxu0 0
  %1813 = vmatpush1.bf16.msra.mxu0 0
  %1814 = vmatprep.subr.bf16.mxu0 0
  %1815 = vmatpush1.bf16.msra.mxu0 0
  %1816 = vmatprep.subr.bf16.mxu0 0
  %1817 = vmatpush1.bf16.msra.mxu0 0
  %1818 = vmatprep.subr.bf16.mxu0 0
  %1819 = vmatpush1.bf16.msra.mxu0 %v1802
  %1820 = vmatprep.subr.bf16.mxu0 0
  %1821 = vmatpush2.bf16.msra.mxu0 0
  %1822 = vmatprep.subr.bf16.mxu0 0
  %1823 = vmatpush2.bf16.msra.mxu0 0
  %1824 = vmatprep.subr.bf16.mxu0 0
  %1825 = vmatpush2.bf16.msra.mxu0 0
  %1826 = vmatprep.subr.bf16.mxu0 0
  %1827 = vmatpush2.bf16.msra.mxu0 0
  %1828 = vmatprep.subr.bf16.mxu0 0
  %1829 = vmatpush2.bf16.msra.mxu0 0
  %1830 = vmatprep.subr.bf16.mxu0 0
  %1831 = vmatpush2.bf16.msra.mxu0 0
  %1832 = vmatprep.subr.bf16.mxu0 0
  %1833 = vmatpush2.bf16.msra.mxu0 0
  %1834 = vmatprep.subr.bf16.mxu0 0
  %1835 = vmatpush2.bf16.msra.mxu0 0
  %1836 = vmatprep.mubr.bf16.mxu0 0
  %1837 = vmatmul.mubr.bf16.gmra.mxu0 %v1799
  %v1838 = vpop.f32.mrf.mxu0
  %v1839 = vadd.f32 0.0, %v1838
  %v1840 = vpop.f32.mrf.mxu0
  %v1841 = vpop.f32.mrf.mxu0
  %v1842 = vpop.f32.mrf.mxu0
  %1843 = vdwg.mxu0
  %v1845 = vsel %vm1251, %v1795, 0
  %v1848 = vsel %vm1303, %v990, 0
  %1850 = vmatprep.subr.bf16.mxu0 0
  %1851 = vmatpush1.bf16.msra.mxu0 0
  %1852 = vmatprep.subr.bf16.mxu0 0
  %1853 = vmatpush1.bf16.msra.mxu0 0
  %1854 = vmatprep.subr.bf16.mxu0 0
  %1855 = vmatpush1.bf16.msra.mxu0 0
  %1856 = vmatprep.subr.bf16.mxu0 0
  %1857 = vmatpush1.bf16.msra.mxu0 0
  %1858 = vmatprep.subr.bf16.mxu0 0
  %1859 = vmatpush1.bf16.msra.mxu0 0
  %1860 = vmatprep.subr.bf16.mxu0 0
  %1861 = vmatpush1.bf16.msra.mxu0 0
  %1862 = vmatprep.subr.bf16.mxu0 0
  %1863 = vmatpush1.bf16.msra.mxu0 0
  %1864 = vmatprep.subr.bf16.mxu0 0
  %1865 = vmatpush1.bf16.msra.mxu0 %v1848
  %1866 = vmatprep.subr.bf16.mxu0 0
  %1867 = vmatpush2.bf16.msra.mxu0 0
  %1868 = vmatprep.subr.bf16.mxu0 0
  %1869 = vmatpush2.bf16.msra.mxu0 0
  %1870 = vmatprep.subr.bf16.mxu0 0
  %1871 = vmatpush2.bf16.msra.mxu0 0
  %1872 = vmatprep.subr.bf16.mxu0 0
  %1873 = vmatpush2.bf16.msra.mxu0 0
  %1874 = vmatprep.subr.bf16.mxu0 0
  %1875 = vmatpush2.bf16.msra.mxu0 0
  %1876 = vmatprep.subr.bf16.mxu0 0
  %1877 = vmatpush2.bf16.msra.mxu0 0
  %1878 = vmatprep.subr.bf16.mxu0 0
  %1879 = vmatpush2.bf16.msra.mxu0 0
  %1880 = vmatprep.subr.bf16.mxu0 0
  %1881 = vmatpush2.bf16.msra.mxu0 0
  %1882 = vmatprep.mubr.bf16.mxu0 0
  %1883 = vmatmul.mubr.bf16.gmra.mxu0 %v1845
  %v1884 = vpop.f32.mrf.mxu0
  %v1885 = vadd.f32 0.0, %v1884
  %v1886 = vpop.f32.mrf.mxu0
  %v1887 = vpop.f32.mrf.mxu0
  %v1888 = vpop.f32.mrf.mxu0
  %1889 = vdwg.mxu0
  %v1891 = vsel %vm1251, %v1796, 0
  %v1894 = vsel %vm1303, %v991, 0
  %1896 = vmatprep.subr.bf16.mxu0 0
  %1897 = vmatpush1.bf16.msra.mxu0 0
  %1898 = vmatprep.subr.bf16.mxu0 0
  %1899 = vmatpush1.bf16.msra.mxu0 0
  %1900 = vmatprep.subr.bf16.mxu0 0
  %1901 = vmatpush1.bf16.msra.mxu0 0
  %1902 = vmatprep.subr.bf16.mxu0 0
  %1903 = vmatpush1.bf16.msra.mxu0 0
  %1904 = vmatprep.subr.bf16.mxu0 0
  %1905 = vmatpush1.bf16.msra.mxu0 0
  %1906 = vmatprep.subr.bf16.mxu0 0
  %1907 = vmatpush1.bf16.msra.mxu0 0
  %1908 = vmatprep.subr.bf16.mxu0 0
  %1909 = vmatpush1.bf16.msra.mxu0 0
  %1910 = vmatprep.subr.bf16.mxu0 0
  %1911 = vmatpush1.bf16.msra.mxu0 %v1894
  %1912 = vmatprep.subr.bf16.mxu0 0
  %1913 = vmatpush2.bf16.msra.mxu0 0
  %1914 = vmatprep.subr.bf16.mxu0 0
  %1915 = vmatpush2.bf16.msra.mxu0 0
  %1916 = vmatprep.subr.bf16.mxu0 0
  %1917 = vmatpush2.bf16.msra.mxu0 0
  %1918 = vmatprep.subr.bf16.mxu0 0
  %1919 = vmatpush2.bf16.msra.mxu0 0
  %1920 = vmatprep.subr.bf16.mxu0 0
  %1921 = vmatpush2.bf16.msra.mxu0 0
  %1922 = vmatprep.subr.bf16.mxu0 0
  %1923 = vmatpush2.bf16.msra.mxu0 0
  %1924 = vmatprep.subr.bf16.mxu0 0
  %1925 = vmatpush2.bf16.msra.mxu0 0
  %1926 = vmatprep.subr.bf16.mxu0 0
  %1927 = vmatpush2.bf16.msra.mxu0 0
  %1928 = vmatprep.mubr.bf16.mxu0 0
  %1929 = vmatmul.mubr.bf16.gmra.mxu0 %v1891
  %v1930 = vpop.f32.mrf.mxu0
  %v1931 = vadd.f32 0.0, %v1930
  %v1932 = vpop.f32.mrf.mxu0
  %v1933 = vpop.f32.mrf.mxu0
  %v1934 = vpop.f32.mrf.mxu0
  %1935 = vdwg.mxu0
  %v1937 = vsel %vm1251, %v1797, 0
  %v1940 = vsel %vm1303, %v992, 0
  %1942 = vmatprep.subr.bf16.mxu0 0
  %1943 = vmatpush1.bf16.msra.mxu0 0
  %1944 = vmatprep.subr.bf16.mxu0 0
  %1945 = vmatpush1.bf16.msra.mxu0 0
  %1946 = vmatprep.subr.bf16.mxu0 0
  %1947 = vmatpush1.bf16.msra.mxu0 0
  %1948 = vmatprep.subr.bf16.mxu0 0
  %1949 = vmatpush1.bf16.msra.mxu0 0
  %1950 = vmatprep.subr.bf16.mxu0 0
  %1951 = vmatpush1.bf16.msra.mxu0 0
  %1952 = vmatprep.subr.bf16.mxu0 0
  %1953 = vmatpush1.bf16.msra.mxu0 0
  %1954 = vmatprep.subr.bf16.mxu0 0
  %1955 = vmatpush1.bf16.msra.mxu0 0
  %1956 = vmatprep.subr.bf16.mxu0 0
  %1957 = vmatpush1.bf16.msra.mxu0 %v1940
  %1958 = vmatprep.subr.bf16.mxu0 0
  %1959 = vmatpush2.bf16.msra.mxu0 0
  %1960 = vmatprep.subr.bf16.mxu0 0
  %1961 = vmatpush2.bf16.msra.mxu0 0
  %1962 = vmatprep.subr.bf16.mxu0 0
  %1963 = vmatpush2.bf16.msra.mxu0 0
  %1964 = vmatprep.subr.bf16.mxu0 0
  %1965 = vmatpush2.bf16.msra.mxu0 0
  %1966 = vmatprep.subr.bf16.mxu0 0
  %1967 = vmatpush2.bf16.msra.mxu0 0
  %1968 = vmatprep.subr.bf16.mxu0 0
  %1969 = vmatpush2.bf16.msra.mxu0 0
  %1970 = vmatprep.subr.bf16.mxu0 0
  %1971 = vmatpush2.bf16.msra.mxu0 0
  %1972 = vmatprep.subr.bf16.mxu0 0
  %1973 = vmatpush2.bf16.msra.mxu0 0
  %1974 = vmatprep.mubr.bf16.mxu0 0
  %1975 = vmatmul.mubr.bf16.gmra.mxu0 %v1937
  %v1976 = vpop.f32.mrf.mxu0
  %v1977 = vadd.f32 0.0, %v1976
  %v1978 = vpop.f32.mrf.mxu0
  %v1979 = vpop.f32.mrf.mxu0
  %v1980 = vpop.f32.mrf.mxu0
  %1981 = vdwg.mxu0
  %v1982 = vpack.c.bf16 %v1885, %v1839
  %v1983 = vpack.c.bf16 %v1977, %v1931
  %s1984 = scalar_lea.vmem %s5, 16
  %v1985 = vld [vmem:[%s1984] sm:$0xf]
  %v1986 = vld [vmem:[%s1984 + $0x4] sm:$0xf]
  %v1987 = vld [vmem:[%s1984 + $0x8] sm:$0xf]
  %v1988 = vld [vmem:[%s1984 + $0xc] sm:$0xf]
  %v1993 = vunpack.c.l.b16 %v1985
  %v1994 = vunpack.c.l.b16 %v1986
  %v1995 = vunpack.c.l.b16 %v1987
  %v1996 = vunpack.c.l.b16 %v1988
  %v1997 = vpack.c.b16 %v1994, %v1993
  %v1998 = vpack.c.b16 %v1996, %v1995
  %v2002 = vsel %vm65, %v1982, 0
  %v2005 = vsel %vm65, %v1983, 0
  %2007 = vmatprep.subr.bf16.mxu0 0
  %2008 = vmatpush1.bf16.msra.mxu0 0
  %2009 = vmatprep.subr.bf16.mxu0 0
  %2010 = vmatpush1.bf16.msra.mxu0 0
  %2011 = vmatprep.subr.bf16.mxu0 0
  %2012 = vmatpush1.bf16.msra.mxu0 0
  %2013 = vmatprep.subr.bf16.mxu0 0
  %2014 = vmatpush1.bf16.msra.mxu0 0
  %2015 = vmatprep.subr.bf16.mxu0 0
  %2016 = vmatpush1.bf16.msra.mxu0 0
  %2017 = vmatprep.subr.bf16.mxu0 0
  %2018 = vmatpush1.bf16.msra.mxu0 0
  %2019 = vmatprep.subr.bf16.mxu0 0
  %2020 = vmatpush1.bf16.msra.mxu0 %v1998
  %2021 = vmatprep.subr.bf16.mxu0 0
  %2022 = vmatpush1.bf16.msra.mxu0 %v1997
  %2023 = vmatprep.subr.bf16.mxu0 0
  %2024 = vmatpush2.bf16.msra.mxu0 0
  %2025 = vmatprep.subr.bf16.mxu0 0
  %2026 = vmatpush2.bf16.msra.mxu0 0
  %2027 = vmatprep.subr.bf16.mxu0 0
  %2028 = vmatpush2.bf16.msra.mxu0 0
  %2029 = vmatprep.subr.bf16.mxu0 0
  %2030 = vmatpush2.bf16.msra.mxu0 0
  %2031 = vmatprep.subr.bf16.mxu0 0
  %2032 = vmatpush2.bf16.msra.mxu0 0
  %2033 = vmatprep.subr.bf16.mxu0 0
  %2034 = vmatpush2.bf16.msra.mxu0 0
  %2035 = vmatprep.subr.bf16.mxu0 0
  %2036 = vmatpush2.bf16.msra.mxu0 0
  %2037 = vmatprep.subr.bf16.mxu0 0
  %2038 = vmatpush2.bf16.msra.mxu0 0
  %2039 = vmatprep.mubr.bf16.mxu0 0
  %2040 = vmatmul.mubr.bf16.gmra.mxu0 %v2002
  %v2041 = vpop.f32.mrf.mxu0
  %v2042 = vadd.f32 0.0, %v2041
  %v2043 = vpop.f32.mrf.mxu0
  %v2044 = vpop.f32.mrf.mxu0
  %v2045 = vadd.f32 0.0, %v2044
  %v2046 = vpop.f32.mrf.mxu0
  %2047 = vmatprep.mubr.bf16.mxu0 0
  %2048 = vmatmul.mubr.bf16.gmra.mxu0 %v2005
  %v2049 = vpop.f32.mrf.mxu0
  %v2050 = vadd.f32 0.0, %v2049
  %v2051 = vpop.f32.mrf.mxu0
  %v2052 = vpop.f32.mrf.mxu0
  %v2053 = vadd.f32 0.0, %v2052
  %v2054 = vpop.f32.mrf.mxu0
  %2055 = vdwg.mxu0
  %v2056 = vadd.f32 %v711, %v2042
  %v2057 = vadd.f32 %v714, %v2045
  %v2058 = vadd.f32 %v719, %v2050
  %v2059 = vadd.f32 %v722, %v2053
  %2060 = vst.msk [vmem:[%s6 + $0x8] sm:$0xff] %vm65, %v2056
  %2061 = vst.msk [vmem:[%s6 + $0x20] sm:$0xff] %vm65, %v2057
  %2062 = vst.msk [vmem:[%s6 + $0x38] sm:$0xff] %vm65, %v2058
  %2063 = vst.msk [vmem:[%s6 + $0x50] sm:$0xff] %vm65, %v2059
  %v2065 = vsel %vm65, %v817, 0
  %v2068 = vsel %vm65, %v219, 0
  %2070 = vmatprep.subr.bf16.mxu0 0
  %2071 = vmatpush1.bf16.xpose.msra.mxu0 0
  %2072 = vmatprep.subr.bf16.mxu0 0
  %2073 = vmatpush1.bf16.xpose.msra.mxu0 0
  %2074 = vmatprep.subr.bf16.mxu0 0
  %2075 = vmatpush1.bf16.xpose.msra.mxu0 0
  %2076 = vmatprep.subr.bf16.mxu0 0
  %2077 = vmatpush1.bf16.xpose.msra.mxu0 0
  %2078 = vmatprep.subr.bf16.mxu0 0
  %2079 = vmatpush1.bf16.xpose.msra.mxu0 0
  %2080 = vmatprep.subr.bf16.mxu0 0
  %2081 = vmatpush1.bf16.xpose.msra.mxu0 0
  %2082 = vmatprep.subr.bf16.mxu0 0
  %2083 = vmatpush1.bf16.xpose.msra.mxu0 0
  %2084 = vmatprep.subr.bf16.mxu0 0
  %2085 = vmatpush1.bf16.xpose.msra.mxu0 %v2068
  %2086 = vmatprep.subr.bf16.mxu0 0
  %2087 = vmatpush2.bf16.xpose.msra.mxu0 0
  %2088 = vmatprep.subr.bf16.mxu0 0
  %2089 = vmatpush2.bf16.xpose.msra.mxu0 0
  %2090 = vmatprep.subr.bf16.mxu0 0
  %2091 = vmatpush2.bf16.xpose.msra.mxu0 0
  %2092 = vmatprep.subr.bf16.mxu0 0
  %2093 = vmatpush2.bf16.xpose.msra.mxu0 0
  %2094 = vmatprep.subr.bf16.mxu0 0
  %2095 = vmatpush2.bf16.xpose.msra.mxu0 0
  %2096 = vmatprep.subr.bf16.mxu0 0
  %2097 = vmatpush2.bf16.xpose.msra.mxu0 0
  %2098 = vmatprep.subr.bf16.mxu0 0
  %2099 = vmatpush2.bf16.xpose.msra.mxu0 0
  %2100 = vmatprep.subr.bf16.mxu0 0
  %2101 = vmatpush2.bf16.xpose.msra.mxu0 0
  %2102 = vmatprep.mubr.bf16.mxu0 0
  %2103 = vmatmul.mubr.bf16.gmra.mxu0 %v2065
  %v2104 = vpop.f32.mrf.mxu0
  %v2105 = vadd.f32 0.0, %v2104
  %v2106 = vpop.f32.mrf.mxu0
  %v2107 = vpop.f32.mrf.mxu0
  %v2108 = vpop.f32.mrf.mxu0
  %2109 = vdwg.mxu0
  %v2111 = vsel %vm65, %v818, 0
  %v2114 = vsel %vm65, %v220, 0
  %2116 = vmatprep.subr.bf16.mxu0 0
  %2117 = vmatpush1.bf16.xpose.msra.mxu0 0
  %2118 = vmatprep.subr.bf16.mxu0 0
  %2119 = vmatpush1.bf16.xpose.msra.mxu0 0
  %2120 = vmatprep.subr.bf16.mxu0 0
  %2121 = vmatpush1.bf16.xpose.msra.mxu0 0
  %2122 = vmatprep.subr.bf16.mxu0 0
  %2123 = vmatpush1.bf16.xpose.msra.mxu0 0
  %2124 = vmatprep.subr.bf16.mxu0 0
  %2125 = vmatpush1.bf16.xpose.msra.mxu0 0
  %2126 = vmatprep.subr.bf16.mxu0 0
  %2127 = vmatpush1.bf16.xpose.msra.mxu0 0
  %2128 = vmatprep.subr.bf16.mxu0 0
  %2129 = vmatpush1.bf16.xpose.msra.mxu0 0
  %2130 = vmatprep.subr.bf16.mxu0 0
  %2131 = vmatpush1.bf16.xpose.msra.mxu0 %v2114
  %2132 = vmatprep.subr.bf16.mxu0 0
  %2133 = vmatpush2.bf16.xpose.msra.mxu0 0
  %2134 = vmatprep.subr.bf16.mxu0 0
  %2135 = vmatpush2.bf16.xpose.msra.mxu0 0
  %2136 = vmatprep.subr.bf16.mxu0 0
  %2137 = vmatpush2.bf16.xpose.msra.mxu0 0
  %2138 = vmatprep.subr.bf16.mxu0 0
  %2139 = vmatpush2.bf16.xpose.msra.mxu0 0
  %2140 = vmatprep.subr.bf16.mxu0 0
  %2141 = vmatpush2.bf16.xpose.msra.mxu0 0
  %2142 = vmatprep.subr.bf16.mxu0 0
  %2143 = vmatpush2.bf16.xpose.msra.mxu0 0
  %2144 = vmatprep.subr.bf16.mxu0 0
  %2145 = vmatpush2.bf16.xpose.msra.mxu0 0
  %2146 = vmatprep.subr.bf16.mxu0 0
  %2147 = vmatpush2.bf16.xpose.msra.mxu0 0
  %2148 = vmatprep.mubr.bf16.mxu0 0
  %2149 = vmatmul.mubr.bf16.gmra.mxu0 %v2111
  %v2150 = vpop.f32.mrf.mxu0
  %v2151 = vadd.f32 0.0, %v2150
  %v2152 = vpop.f32.mrf.mxu0
  %v2153 = vpop.f32.mrf.mxu0
  %v2154 = vpop.f32.mrf.mxu0
  %2155 = vdwg.mxu0
  %v2157 = vsel %vm65, %v819, 0
  %v2160 = vsel %vm65, %v221, 0
  %2162 = vmatprep.subr.bf16.mxu0 0
  %2163 = vmatpush1.bf16.xpose.msra.mxu0 0
  %2164 = vmatprep.subr.bf16.mxu0 0
  %2165 = vmatpush1.bf16.xpose.msra.mxu0 0
  %2166 = vmatprep.subr.bf16.mxu0 0
  %2167 = vmatpush1.bf16.xpose.msra.mxu0 0
  %2168 = vmatprep.subr.bf16.mxu0 0
  %2169 = vmatpush1.bf16.xpose.msra.mxu0 0
  %2170 = vmatprep.subr.bf16.mxu0 0
  %2171 = vmatpush1.bf16.xpose.msra.mxu0 0
  %2172 = vmatprep.subr.bf16.mxu0 0
  %2173 = vmatpush1.bf16.xpose.msra.mxu0 0
  %2174 = vmatprep.subr.bf16.mxu0 0
  %2175 = vmatpush1.bf16.xpose.msra.mxu0 0
  %2176 = vmatprep.subr.bf16.mxu0 0
  %2177 = vmatpush1.bf16.xpose.msra.mxu0 %v2160
  %2178 = vmatprep.subr.bf16.mxu0 0
  %2179 = vmatpush2.bf16.xpose.msra.mxu0 0
  %2180 = vmatprep.subr.bf16.mxu0 0
  %2181 = vmatpush2.bf16.xpose.msra.mxu0 0
  %2182 = vmatprep.subr.bf16.mxu0 0
  %2183 = vmatpush2.bf16.xpose.msra.mxu0 0
  %2184 = vmatprep.subr.bf16.mxu0 0
  %2185 = vmatpush2.bf16.xpose.msra.mxu0 0
  %2186 = vmatprep.subr.bf16.mxu0 0
  %2187 = vmatpush2.bf16.xpose.msra.mxu0 0
  %2188 = vmatprep.subr.bf16.mxu0 0
  %2189 = vmatpush2.bf16.xpose.msra.mxu0 0
  %2190 = vmatprep.subr.bf16.mxu0 0
  %2191 = vmatpush2.bf16.xpose.msra.mxu0 0
  %2192 = vmatprep.subr.bf16.mxu0 0
  %2193 = vmatpush2.bf16.xpose.msra.mxu0 0
  %2194 = vmatprep.mubr.bf16.mxu0 0
  %2195 = vmatmul.mubr.bf16.gmra.mxu0 %v2157
  %v2196 = vpop.f32.mrf.mxu0
  %v2197 = vadd.f32 0.0, %v2196
  %v2198 = vpop.f32.mrf.mxu0
  %v2199 = vpop.f32.mrf.mxu0
  %v2200 = vpop.f32.mrf.mxu0
  %2201 = vdwg.mxu0
  %v2203 = vsel %vm65, %v820, 0
  %v2206 = vsel %vm65, %v222, 0
  %2208 = vmatprep.subr.bf16.mxu0 0
  %2209 = vmatpush1.bf16.xpose.msra.mxu0 0
  %2210 = vmatprep.subr.bf16.mxu0 0
  %2211 = vmatpush1.bf16.xpose.msra.mxu0 0
  %2212 = vmatprep.subr.bf16.mxu0 0
  %2213 = vmatpush1.bf16.xpose.msra.mxu0 0
  %2214 = vmatprep.subr.bf16.mxu0 0
  %2215 = vmatpush1.bf16.xpose.msra.mxu0 0
  %2216 = vmatprep.subr.bf16.mxu0 0
  %2217 = vmatpush1.bf16.xpose.msra.mxu0 0
  %2218 = vmatprep.subr.bf16.mxu0 0
  %2219 = vmatpush1.bf16.xpose.msra.mxu0 0
  %2220 = vmatprep.subr.bf16.mxu0 0
  %2221 = vmatpush1.bf16.xpose.msra.mxu0 0
  %2222 = vmatprep.subr.bf16.mxu0 0
  %2223 = vmatpush1.bf16.xpose.msra.mxu0 %v2206
  %2224 = vmatprep.subr.bf16.mxu0 0
  %2225 = vmatpush2.bf16.xpose.msra.mxu0 0
  %2226 = vmatprep.subr.bf16.mxu0 0
  %2227 = vmatpush2.bf16.xpose.msra.mxu0 0
  %2228 = vmatprep.subr.bf16.mxu0 0
  %2229 = vmatpush2.bf16.xpose.msra.mxu0 0
  %2230 = vmatprep.subr.bf16.mxu0 0
  %2231 = vmatpush2.bf16.xpose.msra.mxu0 0
  %2232 = vmatprep.subr.bf16.mxu0 0
  %2233 = vmatpush2.bf16.xpose.msra.mxu0 0
  %2234 = vmatprep.subr.bf16.mxu0 0
  %2235 = vmatpush2.bf16.xpose.msra.mxu0 0
  %2236 = vmatprep.subr.bf16.mxu0 0
  %2237 = vmatpush2.bf16.xpose.msra.mxu0 0
  %2238 = vmatprep.subr.bf16.mxu0 0
  %2239 = vmatpush2.bf16.xpose.msra.mxu0 0
  %2240 = vmatprep.mubr.bf16.mxu0 0
  %2241 = vmatmul.mubr.bf16.gmra.mxu0 %v2203
  %v2242 = vpop.f32.mrf.mxu0
  %v2243 = vadd.f32 0.0, %v2242
  %v2244 = vpop.f32.mrf.mxu0
  %v2245 = vpop.f32.mrf.mxu0
  %v2246 = vpop.f32.mrf.mxu0
  %2247 = vdwg.mxu0
  %v2248 = vsel %vm1251, %v2105, -inf
  %2249 = vmax.xlane.f32.xlu0 %v2248
  %v2250 = vpop.xlane.xlu0 %2249
  %v2251 = vsel %vm1251, %v2151, -inf
  %2252 = vmax.xlane.f32.xlu0 %v2251
  %v2253 = vpop.xlane.xlu0 %2252
  %v2254 = vsel %vm1251, %v2197, -inf
  %2255 = vmax.xlane.f32.xlu0 %v2254
  %v2256 = vpop.xlane.xlu0 %2255
  %v2257 = vsel %vm1251, %v2243, -inf
  %2258 = vmax.xlane.f32.xlu0 %v2257
  %v2259 = vpop.xlane.xlu0 %2258
  %v2260 = vsub.f32 %v2105, %v2250
  %v2261 = vsub.f32 %v2151, %v2253
  %v2262 = vsub.f32 %v2197, %v2256
  %v2263 = vsub.f32 %v2243, %v2259
  %v2264 = vmul.f32 %v2260, 1.442695
  %v2265 = vpow.pop %v2264
  %v2266 = vmul.f32 %v2261, 1.442695
  %v2267 = vpow.pop %v2266
  %v2268 = vmul.f32 %v2262, 1.442695
  %v2269 = vpow.pop %v2268
  %v2270 = vmul.f32 %v2263, 1.442695
  %v2271 = vpow.pop %v2270
  %v2272 = vsel %vm1251, %v2265, 0.0
  %2273 = vadd.xlane.f32.xlu0 %v2272
  %v2274 = vpop.xlane.xlu0 %2273
  %v2275 = vsel %vm1251, %v2267, 0.0
  %2276 = vadd.xlane.f32.xlu0 %v2275
  %v2277 = vpop.xlane.xlu0 %2276
  %v2278 = vsel %vm1251, %v2269, 0.0
  %2279 = vadd.xlane.f32.xlu0 %v2278
  %v2280 = vpop.xlane.xlu0 %2279
  %v2281 = vsel %vm1251, %v2271, 0.0
  %2282 = vadd.xlane.f32.xlu0 %v2281
  %v2283 = vpop.xlane.xlu0 %2282
  %v2284 = vrcp.pop %v2274
  %v2285 = vrcp.pop %v2277
  %v2286 = vrcp.pop %v2280
  %v2287 = vrcp.pop %v2283
  %v2288 = vmul.f32 %v2265, %v2284
  %v2289 = vmul.f32 %v2267, %v2285
  %v2290 = vmul.f32 %v2269, %v2286
  %v2291 = vmul.f32 %v2271, %v2287
  %v2292 = vpack.c.bf16 %v2288, %v2288
  %v2293 = vpack.c.bf16 %v2289, %v2289
  %v2294 = vpack.c.bf16 %v2290, %v2290
  %v2295 = vpack.c.bf16 %v2291, %v2291
  %v2297 = vsel %vm1251, %v2292, 0
  %v2300 = vsel %vm1303, %v305, 0
  %2302 = vmatprep.subr.bf16.mxu0 0
  %2303 = vmatpush1.bf16.msra.mxu0 0
  %2304 = vmatprep.subr.bf16.mxu0 0
  %2305 = vmatpush1.bf16.msra.mxu0 0
  %2306 = vmatprep.subr.bf16.mxu0 0
  %2307 = vmatpush1.bf16.msra.mxu0 0
  %2308 = vmatprep.subr.bf16.mxu0 0
  %2309 = vmatpush1.bf16.msra.mxu0 0
  %2310 = vmatprep.subr.bf16.mxu0 0
  %2311 = vmatpush1.bf16.msra.mxu0 0
  %2312 = vmatprep.subr.bf16.mxu0 0
  %2313 = vmatpush1.bf16.msra.mxu0 0
  %2314 = vmatprep.subr.bf16.mxu0 0
  %2315 = vmatpush1.bf16.msra.mxu0 0
  %2316 = vmatprep.subr.bf16.mxu0 0
  %2317 = vmatpush1.bf16.msra.mxu0 %v2300
  %2318 = vmatprep.subr.bf16.mxu0 0
  %2319 = vmatpush2.bf16.msra.mxu0 0
  %2320 = vmatprep.subr.bf16.mxu0 0
  %2321 = vmatpush2.bf16.msra.mxu0 0
  %2322 = vmatprep.subr.bf16.mxu0 0
  %2323 = vmatpush2.bf16.msra.mxu0 0
  %2324 = vmatprep.subr.bf16.mxu0 0
  %2325 = vmatpush2.bf16.msra.mxu0 0
  %2326 = vmatprep.subr.bf16.mxu0 0
  %2327 = vmatpush2.bf16.msra.mxu0 0
  %2328 = vmatprep.subr.bf16.mxu0 0
  %2329 = vmatpush2.bf16.msra.mxu0 0
  %2330 = vmatprep.subr.bf16.mxu0 0
  %2331 = vmatpush2.bf16.msra.mxu0 0
  %2332 = vmatprep.subr.bf16.mxu0 0
  %2333 = vmatpush2.bf16.msra.mxu0 0
  %2334 = vmatprep.mubr.bf16.mxu0 0
  %2335 = vmatmul.mubr.bf16.gmra.mxu0 %v2297
  %v2336 = vpop.f32.mrf.mxu0
  %v2337 = vadd.f32 0.0, %v2336
  %v2338 = vpop.f32.mrf.mxu0
  %v2339 = vpop.f32.mrf.mxu0
  %v2340 = vpop.f32.mrf.mxu0
  %2341 = vdwg.mxu0
  %v2343 = vsel %vm1251, %v2293, 0
  %v2346 = vsel %vm1303, %v306, 0
  %2348 = vmatprep.subr.bf16.mxu0 0
  %2349 = vmatpush1.bf16.msra.mxu0 0
  %2350 = vmatprep.subr.bf16.mxu0 0
  %2351 = vmatpush1.bf16.msra.mxu0 0
  %2352 = vmatprep.subr.bf16.mxu0 0
  %2353 = vmatpush1.bf16.msra.mxu0 0
  %2354 = vmatprep.subr.bf16.mxu0 0
  %2355 = vmatpush1.bf16.msra.mxu0 0
  %2356 = vmatprep.subr.bf16.mxu0 0
  %2357 = vmatpush1.bf16.msra.mxu0 0
  %2358 = vmatprep.subr.bf16.mxu0 0
  %2359 = vmatpush1.bf16.msra.mxu0 0
  %2360 = vmatprep.subr.bf16.mxu0 0
  %2361 = vmatpush1.bf16.msra.mxu0 0
  %2362 = vmatprep.subr.bf16.mxu0 0
  %2363 = vmatpush1.bf16.msra.mxu0 %v2346
  %2364 = vmatprep.subr.bf16.mxu0 0
  %2365 = vmatpush2.bf16.msra.mxu0 0
  %2366 = vmatprep.subr.bf16.mxu0 0
  %2367 = vmatpush2.bf16.msra.mxu0 0
  %2368 = vmatprep.subr.bf16.mxu0 0
  %2369 = vmatpush2.bf16.msra.mxu0 0
  %2370 = vmatprep.subr.bf16.mxu0 0
  %2371 = vmatpush2.bf16.msra.mxu0 0
  %2372 = vmatprep.subr.bf16.mxu0 0
  %2373 = vmatpush2.bf16.msra.mxu0 0
  %2374 = vmatprep.subr.bf16.mxu0 0
  %2375 = vmatpush2.bf16.msra.mxu0 0
  %2376 = vmatprep.subr.bf16.mxu0 0
  %2377 = vmatpush2.bf16.msra.mxu0 0
  %2378 = vmatprep.subr.bf16.mxu0 0
  %2379 = vmatpush2.bf16.msra.mxu0 0
  %2380 = vmatprep.mubr.bf16.mxu0 0
  %2381 = vmatmul.mubr.bf16.gmra.mxu0 %v2343
  %v2382 = vpop.f32.mrf.mxu0
  %v2383 = vadd.f32 0.0, %v2382
  %v2384 = vpop.f32.mrf.mxu0
  %v2385 = vpop.f32.mrf.mxu0
  %v2386 = vpop.f32.mrf.mxu0
  %2387 = vdwg.mxu0
  %v2389 = vsel %vm1251, %v2294, 0
  %v2392 = vsel %vm1303, %v307, 0
  %2394 = vmatprep.subr.bf16.mxu0 0
  %2395 = vmatpush1.bf16.msra.mxu0 0
  %2396 = vmatprep.subr.bf16.mxu0 0
  %2397 = vmatpush1.bf16.msra.mxu0 0
  %2398 = vmatprep.subr.bf16.mxu0 0
  %2399 = vmatpush1.bf16.msra.mxu0 0
  %2400 = vmatprep.subr.bf16.mxu0 0
  %2401 = vmatpush1.bf16.msra.mxu0 0
  %2402 = vmatprep.subr.bf16.mxu0 0
  %2403 = vmatpush1.bf16.msra.mxu0 0
  %2404 = vmatprep.subr.bf16.mxu0 0
  %2405 = vmatpush1.bf16.msra.mxu0 0
  %2406 = vmatprep.subr.bf16.mxu0 0
  %2407 = vmatpush1.bf16.msra.mxu0 0
  %2408 = vmatprep.subr.bf16.mxu0 0
  %2409 = vmatpush1.bf16.msra.mxu0 %v2392
  %2410 = vmatprep.subr.bf16.mxu0 0
  %2411 = vmatpush2.bf16.msra.mxu0 0
  %2412 = vmatprep.subr.bf16.mxu0 0
  %2413 = vmatpush2.bf16.msra.mxu0 0
  %2414 = vmatprep.subr.bf16.mxu0 0
  %2415 = vmatpush2.bf16.msra.mxu0 0
  %2416 = vmatprep.subr.bf16.mxu0 0
  %2417 = vmatpush2.bf16.msra.mxu0 0
  %2418 = vmatprep.subr.bf16.mxu0 0
  %2419 = vmatpush2.bf16.msra.mxu0 0
  %2420 = vmatprep.subr.bf16.mxu0 0
  %2421 = vmatpush2.bf16.msra.mxu0 0
  %2422 = vmatprep.subr.bf16.mxu0 0
  %2423 = vmatpush2.bf16.msra.mxu0 0
  %2424 = vmatprep.subr.bf16.mxu0 0
  %2425 = vmatpush2.bf16.msra.mxu0 0
  %2426 = vmatprep.mubr.bf16.mxu0 0
  %2427 = vmatmul.mubr.bf16.gmra.mxu0 %v2389
  %v2428 = vpop.f32.mrf.mxu0
  %v2429 = vadd.f32 0.0, %v2428
  %v2430 = vpop.f32.mrf.mxu0
  %v2431 = vpop.f32.mrf.mxu0
  %v2432 = vpop.f32.mrf.mxu0
  %2433 = vdwg.mxu0
  %v2435 = vsel %vm1251, %v2295, 0
  %v2438 = vsel %vm1303, %v308, 0
  %2440 = vmatprep.subr.bf16.mxu0 0
  %2441 = vmatpush1.bf16.msra.mxu0 0
  %2442 = vmatprep.subr.bf16.mxu0 0
  %2443 = vmatpush1.bf16.msra.mxu0 0
  %2444 = vmatprep.subr.bf16.mxu0 0
  %2445 = vmatpush1.bf16.msra.mxu0 0
  %2446 = vmatprep.subr.bf16.mxu0 0
  %2447 = vmatpush1.bf16.msra.mxu0 0
  %2448 = vmatprep.subr.bf16.mxu0 0
  %2449 = vmatpush1.bf16.msra.mxu0 0
  %2450 = vmatprep.subr.bf16.mxu0 0
  %2451 = vmatpush1.bf16.msra.mxu0 0
  %2452 = vmatprep.subr.bf16.mxu0 0
  %2453 = vmatpush1.bf16.msra.mxu0 0
  %2454 = vmatprep.subr.bf16.mxu0 0
  %2455 = vmatpush1.bf16.msra.mxu0 %v2438
  %2456 = vmatprep.subr.bf16.mxu0 0
  %2457 = vmatpush2.bf16.msra.mxu0 0
  %2458 = vmatprep.subr.bf16.mxu0 0
  %2459 = vmatpush2.bf16.msra.mxu0 0
  %2460 = vmatprep.subr.bf16.mxu0 0
  %2461 = vmatpush2.bf16.msra.mxu0 0
  %2462 = vmatprep.subr.bf16.mxu0 0
  %2463 = vmatpush2.bf16.msra.mxu0 0
  %2464 = vmatprep.subr.bf16.mxu0 0
  %2465 = vmatpush2.bf16.msra.mxu0 0
  %2466 = vmatprep.subr.bf16.mxu0 0
  %2467 = vmatpush2.bf16.msra.mxu0 0
  %2468 = vmatprep.subr.bf16.mxu0 0
  %2469 = vmatpush2.bf16.msra.mxu0 0
  %2470 = vmatprep.subr.bf16.mxu0 0
  %2471 = vmatpush2.bf16.msra.mxu0 0
  %2472 = vmatprep.mubr.bf16.mxu0 0
  %2473 = vmatmul.mubr.bf16.gmra.mxu0 %v2435
  %v2474 = vpop.f32.mrf.mxu0
  %v2475 = vadd.f32 0.0, %v2474
  %v2476 = vpop.f32.mrf.mxu0
  %v2477 = vpop.f32.mrf.mxu0
  %v2478 = vpop.f32.mrf.mxu0
  %2479 = vdwg.mxu0
  %v2480 = vpack.c.bf16 %v2383, %v2337
  %v2481 = vpack.c.bf16 %v2475, %v2429
  %s2482 = scalar_lea.vmem %s5, 32
  %v2483 = vld [vmem:[%s2482] sm:$0xf]
  %v2484 = vld [vmem:[%s2482 + $0x4] sm:$0xf]
  %v2485 = vld [vmem:[%s2482 + $0x8] sm:$0xf]
  %v2486 = vld [vmem:[%s2482 + $0xc] sm:$0xf]
  %v2491 = vunpack.c.l.b16 %v2483
  %v2492 = vunpack.c.l.b16 %v2484
  %v2493 = vunpack.c.l.b16 %v2485
  %v2494 = vunpack.c.l.b16 %v2486
  %v2495 = vpack.c.b16 %v2492, %v2491
  %v2496 = vpack.c.b16 %v2494, %v2493
  %v2500 = vsel %vm65, %v2480, 0
  %v2503 = vsel %vm65, %v2481, 0
  %2505 = vmatprep.subr.bf16.mxu0 0
  %2506 = vmatpush1.bf16.msra.mxu0 0
  %2507 = vmatprep.subr.bf16.mxu0 0
  %2508 = vmatpush1.bf16.msra.mxu0 0
  %2509 = vmatprep.subr.bf16.mxu0 0
  %2510 = vmatpush1.bf16.msra.mxu0 0
  %2511 = vmatprep.subr.bf16.mxu0 0
  %2512 = vmatpush1.bf16.msra.mxu0 0
  %2513 = vmatprep.subr.bf16.mxu0 0
  %2514 = vmatpush1.bf16.msra.mxu0 0
  %2515 = vmatprep.subr.bf16.mxu0 0
  %2516 = vmatpush1.bf16.msra.mxu0 0
  %2517 = vmatprep.subr.bf16.mxu0 0
  %2518 = vmatpush1.bf16.msra.mxu0 %v2496
  %2519 = vmatprep.subr.bf16.mxu0 0
  %2520 = vmatpush1.bf16.msra.mxu0 %v2495
  %2521 = vmatprep.subr.bf16.mxu0 0
  %2522 = vmatpush2.bf16.msra.mxu0 0
  %2523 = vmatprep.subr.bf16.mxu0 0
  %2524 = vmatpush2.bf16.msra.mxu0 0
  %2525 = vmatprep.subr.bf16.mxu0 0
  %2526 = vmatpush2.bf16.msra.mxu0 0
  %2527 = vmatprep.subr.bf16.mxu0 0
  %2528 = vmatpush2.bf16.msra.mxu0 0
  %2529 = vmatprep.subr.bf16.mxu0 0
  %2530 = vmatpush2.bf16.msra.mxu0 0
  %2531 = vmatprep.subr.bf16.mxu0 0
  %2532 = vmatpush2.bf16.msra.mxu0 0
  %2533 = vmatprep.subr.bf16.mxu0 0
  %2534 = vmatpush2.bf16.msra.mxu0 0
  %2535 = vmatprep.subr.bf16.mxu0 0
  %2536 = vmatpush2.bf16.msra.mxu0 0
  %2537 = vmatprep.mubr.bf16.mxu0 0
  %2538 = vmatmul.mubr.bf16.gmra.mxu0 %v2500
  %v2539 = vpop.f32.mrf.mxu0
  %v2540 = vadd.f32 0.0, %v2539
  %v2541 = vpop.f32.mrf.mxu0
  %v2542 = vpop.f32.mrf.mxu0
  %v2543 = vadd.f32 0.0, %v2542
  %v2544 = vpop.f32.mrf.mxu0
  %2545 = vmatprep.mubr.bf16.mxu0 0
  %2546 = vmatmul.mubr.bf16.gmra.mxu0 %v2503
  %v2547 = vpop.f32.mrf.mxu0
  %v2548 = vadd.f32 0.0, %v2547
  %v2549 = vpop.f32.mrf.mxu0
  %v2550 = vpop.f32.mrf.mxu0
  %v2551 = vadd.f32 0.0, %v2550
  %v2552 = vpop.f32.mrf.mxu0
  %2553 = vdwg.mxu0
  %v2554 = vadd.f32 %v1053, %v2540
  %v2555 = vadd.f32 %v1056, %v2543
  %v2556 = vadd.f32 %v1061, %v2548
  %v2557 = vadd.f32 %v1064, %v2551
  %2558 = vst.msk [vmem:[%s6 + $0x10] sm:$0xff] %vm65, %v2554
  %2559 = vst.msk [vmem:[%s6 + $0x28] sm:$0xff] %vm65, %v2555
  %2560 = vst.msk [vmem:[%s6 + $0x40] sm:$0xff] %vm65, %v2556
  %2561 = vst.msk [vmem:[%s6 + $0x58] sm:$0xff] %vm65, %v2557
  // Predicated region
  $region26: #{trimodal_cross_attention.1} parent=0 // pred_check
    _
  $region27: #{trimodal_cross_attention.1} parent=0 // pred_check_branch
    %2563 = sbr.rel (0) target = $region29
  $region28: #{trimodal_cross_attention.1} parent=0 // pred_region
    _
  $region29: #{trimodal_cross_attention.1} parent=0 // pred_fallthru
    _
  // Predicated region
  $region30: #{trimodal_cross_attention.1} parent=0 // pred_check
    _
  $region31: #{trimodal_cross_attention.1} parent=0 // pred_check_branch
    %2565 = sbr.rel (0) target = $region33
  $region32: #{trimodal_cross_attention.1} parent=0 // pred_region
    _
  $region33: #{trimodal_cross_attention.1} parent=0 // pred_fallthru
    _

</llo_original>
